<compile_context>
chip_gen: v7x
topology: tpu7x:2x2x1
jax: 0.10.0
libtpu: 0.0.40
codegen_flags: <defaults>
</compile_context>

<pallas_src>
import functools
import math

import jax
import jax.numpy as jnp
from jax.experimental import pallas as pl
from jax.experimental.pallas import tpu as pltpu

NUM_HEADS = 8
BN_EPS = 1e-5


# ---------------------------------------------------------------------------
# Fused kernel: MHA (cross attention) + residual + BatchNorm1d + Linear/Tanh/Linear
# ---------------------------------------------------------------------------
def _wikisql_fused_kernel(cols_ref, text_ref,
                          wq_ref, wkv_ref, wo_ref, w1_ref, w2_ref, vec_ref,
                          out_ref, *, num_heads, eps):
    B, Lc, H = cols_ref.shape
    Lt = text_ref.shape[1]
    hd = H // num_heads
    dim_out = out_ref.shape[1]

    cols = cols_ref[...]                        # (B, Lc, H)  query side
    text = text_ref[...]                        # (B, Lt, H)  key/value side
    cols2 = cols.reshape(B * Lc, H)             # major-dim merges only (layout-free)
    text2 = text.reshape(B * Lt, H)

    vecs = vec_ref[...]                         # (8, W) packed small vectors
    bq, bk, bv = vecs[0:1, :H], vecs[1:2, :H], vecs[2:3, :H]
    bo = vecs[3:4, :H]
    gamma, beta = vecs[4:5, :H], vecs[5:6, :H]
    b1 = vecs[6:7, :H]
    b2 = vecs[7:8, :dim_out]

    # Projections. Weights are pre-permuted to the d-major head layout and the Q
    # projection already carries the 1/sqrt(hd) attention scale; K|V are one matmul.
    q = jnp.dot(cols2, wq_ref[...], preferred_element_type=jnp.float32) + bq
    kv = jnp.dot(text2, wkv_ref[...], preferred_element_type=jnp.float32)
    k = kv[:, :H] + bk
    v = kv[:, H:] + bv

    q3 = q.reshape(B, Lc, H)
    k3 = k.reshape(B, Lt, H)
    v3 = v.reshape(B, Lt, H)

    # All-heads attention scores on the VPU (head index lives on the lane axis):
    # with the d-major permutation, lanes [d*nh : (d+1)*nh] hold component d of every
    # head, so summing hd (=4) broadcast products gives S[b, q, k, h] for all heads.
    s = None
    for d in range(hd):                         # static, hd = 4 (pure VPU, no MXU)
        sl = slice(d * num_heads, (d + 1) * num_heads)
        term = q3[:, :, None, sl] * k3[:, None, :, sl]      # (B, Lc, Lt, nh)
        s = term if s is None else s + term

    # ONE softmax over keys for every (batch, query, head) at once.
    m = jnp.max(s, axis=2, keepdims=True)
    p = jnp.exp(s - m)
    l = jnp.sum(p, axis=2, keepdims=True)
    p = p * (1.0 / l)                           # exact reciprocal (tight parity)

    # Context, still all heads at once; re-assembled to (B*Lc, H) in d-major order.
    ctx_parts = []
    for d in range(hd):
        sl = slice(d * num_heads, (d + 1) * num_heads)
        ctx_parts.append(jnp.sum(p * v3[:, None, :, sl], axis=2))   # (B, Lc, nh)
    ctx = jnp.concatenate(ctx_parts, axis=-1).reshape(B * Lc, H)

    # ONE output projection (Wo rows pre-permuted to match the d-major ctx layout).
    attn = jnp.dot(ctx, wo_ref[...], preferred_element_type=jnp.float32) + bo

    # Residual add + training-mode BatchNorm1d (stats over all B*Lc rows, per channel).
    # One-pass variance: E[x^2] - mean^2.
    # TODO(synk): running_mean / running_var buffer updates (a PyTorch train-mode side
    # effect) are not reproduced; only the forward normalization is.
    x = cols2 + attn
    mean = jnp.mean(x, axis=0, keepdims=True)
    var = jnp.maximum(jnp.mean(x * x, axis=0, keepdims=True) - mean * mean, 0.0)
    y = (x - mean) * jax.lax.rsqrt(var + eps) * gamma + beta

    # Head: Linear -> Tanh -> Linear.
    h1 = jnp.tanh(jnp.dot(y, w1_ref[...], preferred_element_type=jnp.float32) + b1)
    out = jnp.dot(h1, w2_ref[...], preferred_element_type=jnp.float32) + b2
    out_ref[...] = out.astype(out_ref.dtype)    # (B*Lc, dim_out) slab


# ---------------------------------------------------------------------------
# One-time parameter repacking (parameter-load time, NOT the per-call path)
# ---------------------------------------------------------------------------
def pack_params(params, num_heads=NUM_HEADS):
    H = params['wq_t'].shape[0]
    dim_out = params['w2_t'].shape[1]
    hd = H // num_heads
    scale = 1.0 / math.sqrt(hd)

    # Feature permutation: new index j = d*num_heads + h  <-  old index h*hd + d.
    j = jnp.arange(H)
    perm = (j % num_heads) * hd + (j // num_heads)

    wq = params['wq_t'][:, perm] * scale        # 1/sqrt(hd) folded into Q projection
    bq = params['bq'][:, perm] * scale
    wk = params['wk_t'][:, perm]
    bk = params['bk'][:, perm]
    wv = params['wv_t'][:, perm]
    bv = params['bv'][:, perm]
    wo = params['wo_t'][perm, :]
    wkv = jnp.concatenate([wk, wv], axis=1)     # fused (H, 2H) K|V projection

    # Pack the eight small vectors into one (8, W) slab -> a single operand/DMA.
    W = max(H, dim_out)

    def row(vrow):
        r = jnp.zeros((1, W), jnp.float32)
        return r.at[:, :vrow.shape[1]].set(vrow.astype(jnp.float32))

    vecs = jnp.concatenate(
        [row(bq), row(bk), row(bv), row(params['bo']),
         row(params['gamma']), row(params['beta']),
         row(params['b1']), row(params['b2'])], axis=0)     # (8, W)

    return {'wq': wq, 'wkv': wkv, 'wo': wo,
            'w1': params['w1_t'], 'w2': params['w2_t'], 'vecs': vecs}


# ---------------------------------------------------------------------------
# Forward wrapper (jitted; just plumbing around a single no-grid pallas_call)
# ---------------------------------------------------------------------------
@jax.jit
def wikisql_base_forward(text_last_hs, columns_last_hs, packed):
    B, Lt, H = text_last_hs.shape
    _, Lc, _ = columns_last_hs.shape
    dim_out = packed['w2'].shape[1]

    kernel = functools.partial(_wikisql_fused_kernel,
                               num_heads=NUM_HEADS, eps=BN_EPS)
    vmem = pl.BlockSpec(memory_space=pltpu.MemorySpace.VMEM)   # full array, resident
    out2d = pl.pallas_call(
        kernel,
        out_shape=jax.ShapeDtypeStruct((B * Lc, dim_out), jnp.float32),
        in_specs=[vmem] * 8,
        out_specs=vmem,
    )(columns_last_hs, text_last_hs,
      packed['wq'], packed['wkv'], packed['wo'],
      packed['w1'], packed['w2'], packed['vecs'])
    # TODO(synk): on v7x a 'parallel' row-tiled grid (with a two-phase BN stat
    # reduction or eval-mode running stats) would use the second TensorCore.
    return out2d.reshape(B, Lc, dim_out)


# ---------------------------------------------------------------------------
# Pure-JAX reference of the same forward (for verification, uses RAW params)
# ---------------------------------------------------------------------------
def reference_forward(text, cols, params, num_heads=NUM_HEADS, eps=BN_EPS):
    B, Lc, H = cols.shape
    hd = H // num_heads
    Q = cols @ params['wq_t'] + params['bq']
    K = text @ params['wk_t'] + params['bk']
    V = text @ params['wv_t'] + params['bv']

    def split(x):
        b, l, _ = x.shape
        return x.reshape(b, l, num_heads, hd).transpose(0, 2, 1, 3)

    Qh, Kh, Vh = split(Q), split(K), split(V)
    s = jnp.einsum('bhqd,bhkd->bhqk', Qh, Kh) / math.sqrt(hd)
    p = jax.nn.softmax(s, axis=-1)
    ctx = jnp.einsum('bhqk,bhkd->bhqd', p, Vh).transpose(0, 2, 1, 3).reshape(B, Lc, H)
    attn = ctx @ params['wo_t'] + params['bo']

    add = cols + attn
    mean = jnp.mean(add, axis=(0, 1), keepdims=True)
    var = jnp.mean((add - mean) ** 2, axis=(0, 1), keepdims=True)
    y = (add - mean) * jax.lax.rsqrt(var + eps) * params['gamma'] + params['beta']
    h = jnp.tanh(y @ params['w1_t'] + params['b1'])
    return h @ params['w2_t'] + params['b2']


if __name__ == "__main__":
    B, Lt, Lc, H, DIM_OUT = 2, 8, 8, 32, 16   # hidden_dim=32 (8 heads x 4), dim_out=16

    key = jax.random.PRNGKey(0)
    ks = jax.random.split(key, 14)
    sc = 0.1
    f32 = jnp.float32
    params = {
        # MultiheadAttention in_proj / out_proj (stored pre-transposed: x @ W^T)
        'wq_t': jax.random.normal(ks[0], (H, H), f32) * sc,
        'wk_t': jax.random.normal(ks[1], (H, H), f32) * sc,
        'wv_t': jax.random.normal(ks[2], (H, H), f32) * sc,
        'bq':   jax.random.normal(ks[3], (1, H), f32) * sc,
        'bk':   jax.random.normal(ks[4], (1, H), f32) * sc,
        'bv':   jax.random.normal(ks[5], (1, H), f32) * sc,
        'wo_t': jax.random.normal(ks[6], (H, H), f32) * sc,
        'bo':   jax.random.normal(ks[7], (1, H), f32) * sc,
        # BatchNorm1d(H) affine params
        'gamma': jnp.ones((1, H), f32) + 0.05 * jax.random.normal(ks[8], (1, H), f32),
        'beta':  0.05 * jax.random.normal(ks[9], (1, H), f32),
        # out head: Linear(H, H) -> Tanh -> Linear(H, dim_out)
        'w1_t': jax.random.normal(ks[10], (H, H), f32) * sc,
        'b1':   jax.random.normal(ks[11], (1, H), f32) * sc,
        'w2_t': jax.random.normal(ks[12], (H, DIM_OUT), f32) * sc,
        'b2':   jax.random.normal(ks[13], (1, DIM_OUT), f32) * sc,
    }
    packed = jax.tree_util.tree_map(jax.block_until_ready, pack_params(params))

    kx = jax.random.split(jax.random.PRNGKey(1), 2)
    text_last_hs = jax.random.normal(kx[0], (B, Lt, H), f32)
    columns_last_hs = jax.random.normal(kx[1], (B, Lc, H), f32)

    out = jax.block_until_ready(
        wikisql_base_forward(text_last_hs, columns_last_hs, packed))
    ref = reference_forward(text_last_hs, columns_last_hs, params)

    assert out.shape == (B, Lc, DIM_OUT), out.shape
    assert jnp.all(jnp.isfinite(out))
    assert jnp.allclose(out, ref, rtol=1e-4, atol=1e-4)
    print("KERNEL_OK")
</pallas_src>

<mosaic_0001>
module attributes {stable_mosaic.version = 11 : i64} {
  func.func @_wikisql_fused_kernel(%arg0: memref<2x8x32xf32, #tpu.memory_space<vmem>>, %arg1: memref<2x8x32xf32, #tpu.memory_space<vmem>>, %arg2: memref<32x32xf32, #tpu.memory_space<vmem>>, %arg3: memref<32x64xf32, #tpu.memory_space<vmem>>, %arg4: memref<32x32xf32, #tpu.memory_space<vmem>>, %arg5: memref<32x32xf32, #tpu.memory_space<vmem>>, %arg6: memref<32x16xf32, #tpu.memory_space<vmem>>, %arg7: memref<8x32xf32, #tpu.memory_space<vmem>>, %arg8: memref<16x16xf32, #tpu.memory_space<vmem>>) attributes {dimension_semantics = [], scalar_prefetch = 0 : i64, scratch_operands = 0 : i64, tpu.core_type = #tpu.core_type<tc>} {
    %c0 = arith.constant 0 : index
    %c0_0 = arith.constant 0 : index
    %c0_1 = arith.constant 0 : index
    %0 = vector.load %arg0[%c0, %c0_0, %c0_1] : memref<2x8x32xf32, #tpu.memory_space<vmem>>, vector<2x8x32xf32>
    %c0_2 = arith.constant 0 : index
    %c0_3 = arith.constant 0 : index
    %c0_4 = arith.constant 0 : index
    %1 = vector.load %arg1[%c0_2, %c0_3, %c0_4] : memref<2x8x32xf32, #tpu.memory_space<vmem>>, vector<2x8x32xf32>
    %2 = vector.shape_cast %0 : vector<2x8x32xf32> to vector<16x32xf32>
    %3 = vector.shape_cast %1 : vector<2x8x32xf32> to vector<16x32xf32>
    %c0_5 = arith.constant 0 : index
    %c0_6 = arith.constant 0 : index
    %4 = vector.load %arg7[%c0_5, %c0_6] : memref<8x32xf32, #tpu.memory_space<vmem>>, vector<8x32xf32>
    %5 = vector.extract_strided_slice %4 {offsets = [0, 0], sizes = [1, 32], strides = [1, 1]} : vector<8x32xf32> to vector<1x32xf32>
    %6 = vector.extract_strided_slice %4 {offsets = [1, 0], sizes = [1, 32], strides = [1, 1]} : vector<8x32xf32> to vector<1x32xf32>
    %7 = vector.extract_strided_slice %4 {offsets = [2, 0], sizes = [1, 32], strides = [1, 1]} : vector<8x32xf32> to vector<1x32xf32>
    %8 = vector.extract_strided_slice %4 {offsets = [3, 0], sizes = [1, 32], strides = [1, 1]} : vector<8x32xf32> to vector<1x32xf32>
    %9 = vector.extract_strided_slice %4 {offsets = [4, 0], sizes = [1, 32], strides = [1, 1]} : vector<8x32xf32> to vector<1x32xf32>
    %10 = vector.extract_strided_slice %4 {offsets = [5, 0], sizes = [1, 32], strides = [1, 1]} : vector<8x32xf32> to vector<1x32xf32>
    %11 = vector.extract_strided_slice %4 {offsets = [6, 0], sizes = [1, 32], strides = [1, 1]} : vector<8x32xf32> to vector<1x32xf32>
    %12 = vector.extract_strided_slice %4 {offsets = [7, 0], sizes = [1, 16], strides = [1, 1]} : vector<8x32xf32> to vector<1x16xf32>
    %c0_7 = arith.constant 0 : index
    %c0_8 = arith.constant 0 : index
    %13 = vector.load %arg2[%c0_7, %c0_8] : memref<32x32xf32, #tpu.memory_space<vmem>>, vector<32x32xf32>
    %cst = arith.constant dense<0.000000e+00> : vector<16x32xf32>
    %14 = tpu.matmul %2, %13, %cst {dimension_numbers = #tpu.dot_dimension_numbers<[1], [0], [0], [1], [0, 0, 1, 1], [], []>} : vector<16x32xf32>, vector<32x32xf32>, vector<16x32xf32> -> vector<16x32xf32>
    %15 = vector.broadcast %5 : vector<1x32xf32> to vector<16x32xf32>
    %16 = arith.addf %14, %15 : vector<16x32xf32>
    %c0_9 = arith.constant 0 : index
    %c0_10 = arith.constant 0 : index
    %17 = vector.load %arg3[%c0_9, %c0_10] : memref<32x64xf32, #tpu.memory_space<vmem>>, vector<32x64xf32>
    %cst_11 = arith.constant dense<0.000000e+00> : vector<16x64xf32>
    %18 = tpu.matmul %3, %17, %cst_11 {dimension_numbers = #tpu.dot_dimension_numbers<[1], [0], [0], [1], [0, 0, 1, 1], [], []>} : vector<16x32xf32>, vector<32x64xf32>, vector<16x64xf32> -> vector<16x64xf32>
    %19 = vector.extract_strided_slice %18 {offsets = [0, 0], sizes = [16, 32], strides = [1, 1]} : vector<16x64xf32> to vector<16x32xf32>
    %20 = vector.broadcast %6 : vector<1x32xf32> to vector<16x32xf32>
    %21 = arith.addf %19, %20 : vector<16x32xf32>
    %22 = vector.extract_strided_slice %18 {offsets = [0, 32], sizes = [16, 32], strides = [1, 1]} : vector<16x64xf32> to vector<16x32xf32>
    %23 = vector.broadcast %7 : vector<1x32xf32> to vector<16x32xf32>
    %24 = arith.addf %22, %23 : vector<16x32xf32>
    %25 = vector.shape_cast %16 : vector<16x32xf32> to vector<2x8x32xf32>
    %26 = vector.shape_cast %21 : vector<16x32xf32> to vector<2x8x32xf32>
    %27 = vector.shape_cast %24 : vector<16x32xf32> to vector<2x8x32xf32>
    %28 = vector.extract_strided_slice %25 {offsets = [0, 0, 0], sizes = [2, 8, 8], strides = [1, 1, 1]} : vector<2x8x32xf32> to vector<2x8x8xf32>
    %29 = vector.shape_cast %28 : vector<2x8x8xf32> to vector<2x8x1x8xf32>
    %30 = vector.extract_strided_slice %26 {offsets = [0, 0, 0], sizes = [2, 8, 8], strides = [1, 1, 1]} : vector<2x8x32xf32> to vector<2x8x8xf32>
    %31 = vector.shape_cast %30 : vector<2x8x8xf32> to vector<2x1x8x8xf32>
    %32 = vector.broadcast %29 : vector<2x8x1x8xf32> to vector<2x8x8x8xf32>
    %33 = vector.broadcast %31 : vector<2x1x8x8xf32> to vector<2x8x8x8xf32>
    %34 = arith.mulf %32, %33 : vector<2x8x8x8xf32>
    %35 = vector.extract_strided_slice %25 {offsets = [0, 0, 8], sizes = [2, 8, 8], strides = [1, 1, 1]} : vector<2x8x32xf32> to vector<2x8x8xf32>
    %36 = vector.shape_cast %35 : vector<2x8x8xf32> to vector<2x8x1x8xf32>
    %37 = vector.extract_strided_slice %26 {offsets = [0, 0, 8], sizes = [2, 8, 8], strides = [1, 1, 1]} : vector<2x8x32xf32> to vector<2x8x8xf32>
    %38 = vector.shape_cast %37 : vector<2x8x8xf32> to vector<2x1x8x8xf32>
    %39 = vector.broadcast %36 : vector<2x8x1x8xf32> to vector<2x8x8x8xf32>
    %40 = vector.broadcast %38 : vector<2x1x8x8xf32> to vector<2x8x8x8xf32>
    %41 = arith.mulf %39, %40 : vector<2x8x8x8xf32>
    %42 = arith.addf %34, %41 : vector<2x8x8x8xf32>
    %43 = vector.extract_strided_slice %25 {offsets = [0, 0, 16], sizes = [2, 8, 8], strides = [1, 1, 1]} : vector<2x8x32xf32> to vector<2x8x8xf32>
    %44 = vector.shape_cast %43 : vector<2x8x8xf32> to vector<2x8x1x8xf32>
    %45 = vector.extract_strided_slice %26 {offsets = [0, 0, 16], sizes = [2, 8, 8], strides = [1, 1, 1]} : vector<2x8x32xf32> to vector<2x8x8xf32>
    %46 = vector.shape_cast %45 : vector<2x8x8xf32> to vector<2x1x8x8xf32>
    %47 = vector.broadcast %44 : vector<2x8x1x8xf32> to vector<2x8x8x8xf32>
    %48 = vector.broadcast %46 : vector<2x1x8x8xf32> to vector<2x8x8x8xf32>
    %49 = arith.mulf %47, %48 : vector<2x8x8x8xf32>
    %50 = arith.addf %42, %49 : vector<2x8x8x8xf32>
    %51 = vector.extract_strided_slice %25 {offsets = [0, 0, 24], sizes = [2, 8, 8], strides = [1, 1, 1]} : vector<2x8x32xf32> to vector<2x8x8xf32>
    %52 = vector.shape_cast %51 : vector<2x8x8xf32> to vector<2x8x1x8xf32>
    %53 = vector.extract_strided_slice %26 {offsets = [0, 0, 24], sizes = [2, 8, 8], strides = [1, 1, 1]} : vector<2x8x32xf32> to vector<2x8x8xf32>
    %54 = vector.shape_cast %53 : vector<2x8x8xf32> to vector<2x1x8x8xf32>
    %55 = vector.broadcast %52 : vector<2x8x1x8xf32> to vector<2x8x8x8xf32>
    %56 = vector.broadcast %54 : vector<2x1x8x8xf32> to vector<2x8x8x8xf32>
    %57 = arith.mulf %55, %56 : vector<2x8x8x8xf32>
    %58 = arith.addf %50, %57 : vector<2x8x8x8xf32>
    %cst_12 = arith.constant dense<0xFF800000> : vector<2x8x8xf32>
    %59 = vector.multi_reduction <maximumf>, %58, %cst_12 [2] : vector<2x8x8x8xf32> to vector<2x8x8xf32>
    %60 = vector.shape_cast %59 : vector<2x8x8xf32> to vector<2x8x1x8xf32>
    %61 = vector.broadcast %60 : vector<2x8x1x8xf32> to vector<2x8x8x8xf32>
    %62 = arith.subf %58, %61 : vector<2x8x8x8xf32>
    %63 = math.exp %62 : vector<2x8x8x8xf32>
    %cst_13 = arith.constant dense<0.000000e+00> : vector<2x8x8xf32>
    %64 = vector.multi_reduction <add>, %63, %cst_13 [2] : vector<2x8x8x8xf32> to vector<2x8x8xf32>
    %65 = vector.shape_cast %64 : vector<2x8x8xf32> to vector<2x8x1x8xf32>
    %cst_14 = arith.constant 1.000000e+00 : f32
    %66 = vector.broadcast %cst_14 : f32 to vector<2x8x1x8xf32>
    %67 = arith.divf %66, %65 : vector<2x8x1x8xf32>
    %68 = vector.broadcast %67 : vector<2x8x1x8xf32> to vector<2x8x8x8xf32>
    %69 = arith.mulf %63, %68 : vector<2x8x8x8xf32>
    %70 = vector.extract_strided_slice %27 {offsets = [0, 0, 0], sizes = [2, 8, 8], strides = [1, 1, 1]} : vector<2x8x32xf32> to vector<2x8x8xf32>
    %71 = vector.shape_cast %70 : vector<2x8x8xf32> to vector<2x1x8x8xf32>
    %72 = vector.broadcast %71 : vector<2x1x8x8xf32> to vector<2x8x8x8xf32>
    %73 = arith.mulf %69, %72 : vector<2x8x8x8xf32>
    %cst_15 = arith.constant dense<0.000000e+00> : vector<2x8x8xf32>
    %74 = vector.multi_reduction <add>, %73, %cst_15 [2] : vector<2x8x8x8xf32> to vector<2x8x8xf32>
    %75 = vector.extract_strided_slice %27 {offsets = [0, 0, 8], sizes = [2, 8, 8], strides = [1, 1, 1]} : vector<2x8x32xf32> to vector<2x8x8xf32>
    %76 = vector.shape_cast %75 : vector<2x8x8xf32> to vector<2x1x8x8xf32>
    %77 = vector.broadcast %76 : vector<2x1x8x8xf32> to vector<2x8x8x8xf32>
    %78 = arith.mulf %69, %77 : vector<2x8x8x8xf32>
    %cst_16 = arith.constant dense<0.000000e+00> : vector<2x8x8xf32>
    %79 = vector.multi_reduction <add>, %78, %cst_16 [2] : vector<2x8x8x8xf32> to vector<2x8x8xf32>
    %80 = vector.extract_strided_slice %27 {offsets = [0, 0, 16], sizes = [2, 8, 8], strides = [1, 1, 1]} : vector<2x8x32xf32> to vector<2x8x8xf32>
    %81 = vector.shape_cast %80 : vector<2x8x8xf32> to vector<2x1x8x8xf32>
    %82 = vector.broadcast %81 : vector<2x1x8x8xf32> to vector<2x8x8x8xf32>
    %83 = arith.mulf %69, %82 : vector<2x8x8x8xf32>
    %cst_17 = arith.constant dense<0.000000e+00> : vector<2x8x8xf32>
    %84 = vector.multi_reduction <add>, %83, %cst_17 [2] : vector<2x8x8x8xf32> to vector<2x8x8xf32>
    %85 = vector.extract_strided_slice %27 {offsets = [0, 0, 24], sizes = [2, 8, 8], strides = [1, 1, 1]} : vector<2x8x32xf32> to vector<2x8x8xf32>
    %86 = vector.shape_cast %85 : vector<2x8x8xf32> to vector<2x1x8x8xf32>
    %87 = vector.broadcast %86 : vector<2x1x8x8xf32> to vector<2x8x8x8xf32>
    %88 = arith.mulf %69, %87 : vector<2x8x8x8xf32>
    %cst_18 = arith.constant dense<0.000000e+00> : vector<2x8x8xf32>
    %89 = vector.multi_reduction <add>, %88, %cst_18 [2] : vector<2x8x8x8xf32> to vector<2x8x8xf32>
    %90 = tpu.concatenate %74, %79, %84, %89 in 2 : vector<2x8x8xf32>, vector<2x8x8xf32>, vector<2x8x8xf32>, vector<2x8x8xf32> -> vector<2x8x32xf32>
    %91 = vector.shape_cast %90 : vector<2x8x32xf32> to vector<16x32xf32>
    %c0_19 = arith.constant 0 : index
    %c0_20 = arith.constant 0 : index
    %92 = vector.load %arg4[%c0_19, %c0_20] : memref<32x32xf32, #tpu.memory_space<vmem>>, vector<32x32xf32>
    %cst_21 = arith.constant dense<0.000000e+00> : vector<16x32xf32>
    %93 = tpu.matmul %91, %92, %cst_21 {dimension_numbers = #tpu.dot_dimension_numbers<[1], [0], [0], [1], [0, 0, 1, 1], [], []>} : vector<16x32xf32>, vector<32x32xf32>, vector<16x32xf32> -> vector<16x32xf32>
    %94 = vector.broadcast %8 : vector<1x32xf32> to vector<16x32xf32>
    %95 = arith.addf %93, %94 : vector<16x32xf32>
    %96 = arith.addf %2, %95 : vector<16x32xf32>
    %cst_22 = arith.constant dense<0.000000e+00> : vector<32xf32>
    %97 = vector.multi_reduction <add>, %96, %cst_22 [0] : vector<16x32xf32> to vector<32xf32>
    %98 = vector.shape_cast %97 : vector<32xf32> to vector<1x32xf32>
    %cst_23 = arith.constant 1.600000e+01 : f32
    %99 = vector.broadcast %cst_23 : f32 to vector<1x32xf32>
    %100 = arith.divf %98, %99 : vector<1x32xf32>
    %101 = arith.mulf %96, %96 : vector<16x32xf32>
    %cst_24 = arith.constant dense<0.000000e+00> : vector<32xf32>
    %102 = vector.multi_reduction <add>, %101, %cst_24 [0] : vector<16x32xf32> to vector<32xf32>
    %103 = vector.shape_cast %102 : vector<32xf32> to vector<1x32xf32>
    %cst_25 = arith.constant 1.600000e+01 : f32
    %104 = vector.broadcast %cst_25 : f32 to vector<1x32xf32>
    %105 = arith.divf %103, %104 : vector<1x32xf32>
    %106 = arith.mulf %100, %100 : vector<1x32xf32>
    %107 = arith.subf %105, %106 : vector<1x32xf32>
    %cst_26 = arith.constant 0.000000e+00 : f32
    %108 = vector.broadcast %cst_26 : f32 to vector<1x32xf32>
    %109 = arith.maximumf %107, %108 : vector<1x32xf32>
    %110 = vector.broadcast %100 : vector<1x32xf32> to vector<16x32xf32>
    %111 = arith.subf %96, %110 : vector<16x32xf32>
    %cst_27 = arith.constant 9.99999974E-6 : f32
    %112 = vector.broadcast %cst_27 : f32 to vector<1x32xf32>
    %113 = arith.addf %109, %112 : vector<1x32xf32>
    %114 = math.rsqrt %113 : vector<1x32xf32>
    %115 = vector.broadcast %114 : vector<1x32xf32> to vector<16x32xf32>
    %116 = arith.mulf %111, %115 : vector<16x32xf32>
    %117 = vector.broadcast %9 : vector<1x32xf32> to vector<16x32xf32>
    %118 = arith.mulf %116, %117 : vector<16x32xf32>
    %119 = vector.broadcast %10 : vector<1x32xf32> to vector<16x32xf32>
    %120 = arith.addf %118, %119 : vector<16x32xf32>
    %c0_28 = arith.constant 0 : index
    %c0_29 = arith.constant 0 : index
    %121 = vector.load %arg5[%c0_28, %c0_29] : memref<32x32xf32, #tpu.memory_space<vmem>>, vector<32x32xf32>
    %cst_30 = arith.constant dense<0.000000e+00> : vector<16x32xf32>
    %122 = tpu.matmul %120, %121, %cst_30 {dimension_numbers = #tpu.dot_dimension_numbers<[1], [0], [0], [1], [0, 0, 1, 1], [], []>} : vector<16x32xf32>, vector<32x32xf32>, vector<16x32xf32> -> vector<16x32xf32>
    %123 = vector.broadcast %11 : vector<1x32xf32> to vector<16x32xf32>
    %124 = arith.addf %122, %123 : vector<16x32xf32>
    %125 = math.tanh %124 : vector<16x32xf32>
    %c0_31 = arith.constant 0 : index
    %c0_32 = arith.constant 0 : index
    %126 = vector.load %arg6[%c0_31, %c0_32] : memref<32x16xf32, #tpu.memory_space<vmem>>, vector<32x16xf32>
    %cst_33 = arith.constant dense<0.000000e+00> : vector<16x16xf32>
    %127 = tpu.matmul %125, %126, %cst_33 {dimension_numbers = #tpu.dot_dimension_numbers<[1], [0], [0], [1], [0, 0, 1, 1], [], []>} : vector<16x32xf32>, vector<32x16xf32>, vector<16x16xf32> -> vector<16x16xf32>
    %128 = vector.broadcast %12 : vector<1x16xf32> to vector<16x16xf32>
    %129 = arith.addf %127, %128 : vector<16x16xf32>
    %c0_34 = arith.constant 0 : index
    %c0_35 = arith.constant 0 : index
    %130 = vector.load %arg8[%c0_34, %c0_35] : memref<16x16xf32, #tpu.memory_space<vmem>>, vector<16x16xf32>
    tpu.vector_store %arg8[%c0_34, %c0_35], %129 {strides = array<i32>} : memref<16x16xf32, #tpu.memory_space<vmem>>, vector<16x16xf32>,
    return
  }
}

</mosaic_0001>

<llo_original>
// kernel: wikisql_base_forward.1
$region0: #{wikisql_base_forward.1}
  #allocation0 [shape = 'u32[]', space=smem, size = 0x4, offset = 0x4, fixed_abs, tag = 'smem constant byte address 0x4 - core index']
  #allocation1 [shape = 'u32[144,128]{1,0:T(1,128)}', space=vmem, size = 0x12000, scoped, tag = 'internal scratch']
  %s0 = inlined_call_operand.hbm [shape: f32[2,8,32], index: 0, kind: input, shape index: {}]
  %s1 = inlined_call_operand.hbm [shape: f32[2,8,32], index: 1, kind: input, shape index: {}]
  %s2 = inlined_call_operand.vmem [shape: f32[32,32], index: 2, kind: input, shape index: {}]
  %s3 = inlined_call_operand.vmem [shape: f32[32,64], index: 3, kind: input, shape index: {}]
  %s4 = inlined_call_operand.hbm [shape: f32[32,32], index: 4, kind: input, shape index: {}]
  %s5 = inlined_call_operand.hbm [shape: f32[32,32], index: 5, kind: input, shape index: {}]
  %s6 = inlined_call_operand.vmem [shape: f32[32,16], index: 6, kind: input, shape index: {}]
  %s7 = inlined_call_operand.hbm [shape: f32[8,32], index: 7, kind: input, shape index: {}]
  %s8 = inlined_call_operand.hbm [shape: f32[16,16], index: 8, kind: output, shape index: {}]
  %s9 = sld [smem:[#allocation0]]
  $region62: #{wikisql_base_forward.1} parent=0
    _
  %s11 = ssub.s32 1, %s9
  %s12 = scalar_select 0, %s11, %s9
  $region1: #{wikisql_base_forward.1} parent=0
    #allocation2 [shape = 'u8[8192]{0}', space=vmem, size = 0x2000, scoped, tag = 'input window, operand 0, single buffered']
    #allocation3 [shape = 's32[1]{0}', space=sflag, size = 0x4, scoped, tag = 'scoped memory for wikisql_base_forward.1']
    #allocation4 [shape = 's32[1]{0}', space=sflag, size = 0x4, scoped, tag = 'scoped memory for wikisql_base_forward.1']
    #allocation5 [shape = 'u8[8192]{0}', space=vmem, size = 0x2000, scoped, tag = 'input window, operand 1, single buffered']
    #allocation6 [shape = 's32[1]{0}', space=sflag, size = 0x4, scoped, tag = 'scoped memory for wikisql_base_forward.1']
    #allocation7 [shape = 'u8[16384]{0}', space=vmem, size = 0x4000, scoped, tag = 'input window, operand 4, single buffered']
    #allocation8 [shape = 'u8[16384]{0}', space=vmem, size = 0x4000, scoped, tag = 'input window, operand 5, single buffered']
    #allocation9 [shape = 's32[1]{0}', space=sflag, size = 0x4, scoped, tag = 'scoped memory for wikisql_base_forward.1']
    #allocation10 [shape = 'u8[4096]{0}', space=vmem, size = 0x1000, scoped, tag = 'input window, operand 7, single buffered']
    #allocation11 [shape = 'u8[8192]{0}', space=vmem, size = 0x2000, scoped, tag = 'output window, operand 0, single buffered']
    %13 = vsyncpa [#allocation3], 0
    %14 = vsyncpa [#allocation6], 0
    %15 = vsyncpa [#allocation9], 0
    %16 = vsyncpa [#allocation4], 0
    // Predicated region
    $region2: #{wikisql_base_forward.1} parent=1 // pred_check
      _
    $region3: #{wikisql_base_forward.1} parent=1 // pred_check_branch
      %18 = sbr.rel (0) target = $region5
    $region4: #{wikisql_base_forward.1} parent=1 // pred_region
      %s20 = ssub.s32 256, 256
      %21 = vsyncadd [#allocation3], %s20
      %s22 = sshll.u32 [#allocation2], 4
      %s23 = int_to_ptr.vmem [resolvable:$true] %s22
      %28 = dma.hbm_to_vmem [thread:$0]  %s0, 256, %s23, [#allocation3], 128, 128, 8
    $region5: #{wikisql_base_forward.1} parent=1 // pred_fallthru
      _
    // Predicated region
    $region6: #{wikisql_base_forward.1} parent=1 // pred_check
      _
    $region7: #{wikisql_base_forward.1} parent=1 // pred_check_branch
      %30 = sbr.rel (0) target = $region9
    $region8: #{wikisql_base_forward.1} parent=1 // pred_region
      %s32 = ssub.s32 256, 256
      %33 = vsyncadd [#allocation6], %s32
      %s34 = sshll.u32 [#allocation5], 4
      %s35 = int_to_ptr.vmem [resolvable:$true] %s34
      %40 = dma.hbm_to_vmem [thread:$0]  %s1, 256, %s35, [#allocation6], 128, 128, 8
    $region9: #{wikisql_base_forward.1} parent=1 // pred_fallthru
      _
    // Predicated region
    $region10: #{wikisql_base_forward.1} parent=1 // pred_check
      _
    $region11: #{wikisql_base_forward.1} parent=1 // pred_check_branch
      %42 = sbr.rel (0) target = $region13
    $region12: #{wikisql_base_forward.1} parent=1 // pred_region
      _
    $region13: #{wikisql_base_forward.1} parent=1 // pred_fallthru
      _
    // Predicated region
    $region14: #{wikisql_base_forward.1} parent=1 // pred_check
      _
    $region15: #{wikisql_base_forward.1} parent=1 // pred_check_branch
      %44 = sbr.rel (0) target = $region17
    $region16: #{wikisql_base_forward.1} parent=1 // pred_region
      _
    $region17: #{wikisql_base_forward.1} parent=1 // pred_fallthru
      _
    // Predicated region
    $region18: #{wikisql_base_forward.1} parent=1 // pred_check
      _
    $region19: #{wikisql_base_forward.1} parent=1 // pred_check_branch
      %46 = sbr.rel (0) target = $region21
    $region20: #{wikisql_base_forward.1} parent=1 // pred_region
      %s48 = ssub.s32 512, 512
      %49 = vsyncadd [#allocation6], %s48
      %s50 = sshll.u32 [#allocation7], 4
      %s51 = int_to_ptr.vmem [resolvable:$true] %s50
      %56 = dma.hbm_to_vmem [thread:$0]  %s4, 512, %s51, [#allocation6], 128, 128, 8
    $region21: #{wikisql_base_forward.1} parent=1 // pred_fallthru
      _
    // Predicated region
    $region22: #{wikisql_base_forward.1} parent=1 // pred_check
      _
    $region23: #{wikisql_base_forward.1} parent=1 // pred_check_branch
      %58 = sbr.rel (0) target = $region25
    $region24: #{wikisql_base_forward.1} parent=1 // pred_region
      %s60 = ssub.s32 512, 512
      %61 = vsyncadd [#allocation9], %s60
      %s62 = sshll.u32 [#allocation8], 4
      %s63 = int_to_ptr.vmem [resolvable:$true] %s62
      %68 = dma.hbm_to_vmem [thread:$0]  %s5, 512, %s63, [#allocation9], 128, 128, 8
    $region25: #{wikisql_base_forward.1} parent=1 // pred_fallthru
      _
    // Predicated region
    $region26: #{wikisql_base_forward.1} parent=1 // pred_check
      _
    $region27: #{wikisql_base_forward.1} parent=1 // pred_check_branch
      %70 = sbr.rel (0) target = $region29
    $region28: #{wikisql_base_forward.1} parent=1 // pred_region
      _
    $region29: #{wikisql_base_forward.1} parent=1 // pred_fallthru
      _
    // Predicated region
    $region30: #{wikisql_base_forward.1} parent=1 // pred_check
      _
    $region31: #{wikisql_base_forward.1} parent=1 // pred_check_branch
      %72 = sbr.rel (0) target = $region33
    $region32: #{wikisql_base_forward.1} parent=1 // pred_region
      %s74 = ssub.s32 128, 128
      %75 = vsyncadd [#allocation9], %s74
      %s77 = sshll.u32 [#allocation10], 4
      %s78 = int_to_ptr.vmem [resolvable:$true] %s77
      %80 = dma.hbm_to_vmem [thread:$0]  %s7, 128, %s78, [#allocation9]
    $region33: #{wikisql_base_forward.1} parent=1 // pred_fallthru
      _
    // Predicated region
    $region34: #{wikisql_base_forward.1} parent=1 // pred_check
      _
    $region35: #{wikisql_base_forward.1} parent=1 // pred_check_branch
      %82 = sbr.rel (0) target = $region37
    $region36: #{wikisql_base_forward.1} parent=1 // pred_region
      %83 = dma.done [#allocation3], 256
    $region37: #{wikisql_base_forward.1} parent=1 // pred_fallthru
      _
    // Predicated region
    $region38: #{wikisql_base_forward.1} parent=1 // pred_check
      _
    $region39: #{wikisql_base_forward.1} parent=1 // pred_check_branch
      %85 = sbr.rel (0) target = $region41
    $region40: #{wikisql_base_forward.1} parent=1 // pred_region
      %86 = dma.done [#allocation6], 256
    $region41: #{wikisql_base_forward.1} parent=1 // pred_fallthru
      _
    // Predicated region
    $region42: #{wikisql_base_forward.1} parent=1 // pred_check
      _
    $region43: #{wikisql_base_forward.1} parent=1 // pred_check_branch
      %88 = sbr.rel (0) target = $region45
    $region44: #{wikisql_base_forward.1} parent=1 // pred_region
      %89 = dma.done [#allocation6], 512
    $region45: #{wikisql_base_forward.1} parent=1 // pred_fallthru
      _
    // Predicated region
    $region46: #{wikisql_base_forward.1} parent=1 // pred_check
      _
    $region47: #{wikisql_base_forward.1} parent=1 // pred_check_branch
      %91 = sbr.rel (0) target = $region49
    $region48: #{wikisql_base_forward.1} parent=1 // pred_region
      %92 = dma.done [#allocation9], 512
    $region49: #{wikisql_base_forward.1} parent=1 // pred_fallthru
      _
    // Predicated region
    $region50: #{wikisql_base_forward.1} parent=1 // pred_check
      _
    $region51: #{wikisql_base_forward.1} parent=1 // pred_check_branch
      %94 = sbr.rel (0) target = $region53
    $region52: #{wikisql_base_forward.1} parent=1 // pred_region
      %95 = dma.done [#allocation9], 128
    $region53: #{wikisql_base_forward.1} parent=1 // pred_fallthru
      _
    %v96 = vld [vmem:[#allocation2] sm:$0xff]
    %v97 = vld [vmem:[#allocation2 + $0x8] sm:$0xff]
    %v98 = vld [vmem:[#allocation5] sm:$0xff]
    %v99 = vld [vmem:[#allocation5 + $0x8] sm:$0xff]
    %v100 = vld [vmem:[#allocation10] sm:$0xff]
    %v101 = vld [vmem:[%s2] sm:$0xff]
    %v102 = vld [vmem:[%s2 + $0x8] sm:$0xff]
    %v103 = vld [vmem:[%s2 + $0x10] sm:$0xff]
    %v104 = vld [vmem:[%s2 + $0x18] sm:$0xff]
    %v105 = vlaneseq
    %v106 = vshrl.u32 %v105, 7
    %v107 = vsub.s32 0, %v106
    %v108 = vrot.slane %v100, %v107
    %vm109 = vcmask 261120
    %v111 = vsel %vm109, %v96, 0
    %v114 = vsel %vm109, %v97, 0
    %116 = vmatprep.subr.mxu0 0.0
    %117 = vmatpush1.msra.mxu0 %v101
    %118 = vmatprep.subr.mxu0 0.0
    %119 = vmatpush1.msra.mxu0 %v102
    %120 = vmatprep.subr.mxu0 0.0
    %121 = vmatpush1.msra.mxu0 %v103
    %122 = vmatprep.subr.mxu0 0.0
    %123 = vmatpush1.msra.mxu0 %v104
    %124 = vmatprep.subr.mxu0 0.0
    %125 = vmatpush1.msra.mxu0 0.0
    %126 = vmatprep.subr.mxu0 0.0
    %127 = vmatpush1.msra.mxu0 0.0
    %128 = vmatprep.subr.mxu0 0.0
    %129 = vmatpush1.msra.mxu0 0.0
    %130 = vmatprep.subr.mxu0 0.0
    %131 = vmatpush1.msra.mxu0 0.0
    %132 = vmatprep.subr.mxu0 0.0
    %133 = vmatpush1.msra.mxu0 0.0
    %134 = vmatprep.subr.mxu0 0.0
    %135 = vmatpush1.msra.mxu0 0.0
    %136 = vmatprep.subr.mxu0 0.0
    %137 = vmatpush1.msra.mxu0 0.0
    %138 = vmatprep.subr.mxu0 0.0
    %139 = vmatpush1.msra.mxu0 0.0
    %140 = vmatprep.subr.mxu0 0.0
    %141 = vmatpush1.msra.mxu0 0.0
    %142 = vmatprep.subr.mxu0 0.0
    %143 = vmatpush1.msra.mxu0 0.0
    %144 = vmatprep.subr.mxu0 0.0
    %145 = vmatpush1.msra.mxu0 0.0
    %146 = vmatprep.subr.mxu0 0.0
    %147 = vmatpush1.msra.mxu0 0.0
    %148 = vmatprep.subr.mxu0 0.0
    %149 = vmatpush1.msra.mxu0 0.0
    %150 = vmatprep.subr.mxu0 0.0
    %151 = vmatpush1.msra.mxu0 0.0
    %152 = vmatprep.subr.mxu0 0.0
    %153 = vmatpush1.msra.mxu0 0.0
    %154 = vmatprep.subr.mxu0 0.0
    %155 = vmatpush1.msra.mxu0 0.0
    %156 = vmatprep.subr.mxu0 0.0
    %157 = vmatpush1.msra.mxu0 0.0
    %158 = vmatprep.subr.mxu0 0.0
    %159 = vmatpush1.msra.mxu0 0.0
    %160 = vmatprep.subr.mxu0 0.0
    %161 = vmatpush1.msra.mxu0 0.0
    %162 = vmatprep.subr.mxu0 0.0
    %163 = vmatpush1.msra.mxu0 0.0
    %164 = vmatprep.subr.mxu0 0.0
    %165 = vmatpush1.msra.mxu0 0.0
    %166 = vmatprep.subr.mxu0 0.0
    %167 = vmatpush1.msra.mxu0 0.0
    %168 = vmatprep.subr.mxu0 0.0
    %169 = vmatpush1.msra.mxu0 0.0
    %170 = vmatprep.subr.mxu0 0.0
    %171 = vmatpush1.msra.mxu0 0.0
    %172 = vmatprep.subr.mxu0 0.0
    %173 = vmatpush1.msra.mxu0 0.0
    %174 = vmatprep.subr.mxu0 0.0
    %175 = vmatpush1.msra.mxu0 0.0
    %176 = vmatprep.subr.mxu0 0.0
    %177 = vmatpush1.msra.mxu0 0.0
    %178 = vmatprep.subr.mxu0 0.0
    %179 = vmatpush1.msra.mxu0 0.0
    %180 = vmatprep.mubr.f32.mxu0 0.0
    %181 = vmatmul.mubr.f32.gmra.mrb[0].mxu0 %v111
    %v182 = vpop.f32.mrb[0].mxu0
    %v183 = vadd.f32 %v108, %v182
    %v184 = vpop.f32.mrb[0].mxu0
    %185 = vmatprep.mubr.f32.mxu0 0.0
    %186 = vmatmul.mubr.f32.gmra.mrb[0].mxu0 %v114
    %v187 = vpop.f32.mrb[0].mxu0
    %v188 = vadd.f32 %v108, %v187
    %v189 = vpop.f32.mrb[0].mxu0
    %190 = vdwg.mxu0
    %v191 = vld [vmem:[%s3] sm:$0xff]
    %v192 = vld [vmem:[%s3 + $0x8] sm:$0xff]
    %v193 = vld [vmem:[%s3 + $0x10] sm:$0xff]
    %v194 = vld [vmem:[%s3 + $0x18] sm:$0xff]
    %v196 = vsel %vm109, %v98, 0
    %v199 = vsel %vm109, %v99, 0
    %201 = vmatprep.subr.mxu0 0.0
    %202 = vmatpush1.msra.mxu0 %v191
    %203 = vmatprep.subr.mxu0 0.0
    %204 = vmatpush1.msra.mxu0 %v192
    %205 = vmatprep.subr.mxu0 0.0
    %206 = vmatpush1.msra.mxu0 %v193
    %207 = vmatprep.subr.mxu0 0.0
    %208 = vmatpush1.msra.mxu0 %v194
    %209 = vmatprep.subr.mxu0 0.0
    %210 = vmatpush1.msra.mxu0 0.0
    %211 = vmatprep.subr.mxu0 0.0
    %212 = vmatpush1.msra.mxu0 0.0
    %213 = vmatprep.subr.mxu0 0.0
    %214 = vmatpush1.msra.mxu0 0.0
    %215 = vmatprep.subr.mxu0 0.0
    %216 = vmatpush1.msra.mxu0 0.0
    %217 = vmatprep.subr.mxu0 0.0
    %218 = vmatpush1.msra.mxu0 0.0
    %219 = vmatprep.subr.mxu0 0.0
    %220 = vmatpush1.msra.mxu0 0.0
    %221 = vmatprep.subr.mxu0 0.0
    %222 = vmatpush1.msra.mxu0 0.0
    %223 = vmatprep.subr.mxu0 0.0
    %224 = vmatpush1.msra.mxu0 0.0
    %225 = vmatprep.subr.mxu0 0.0
    %226 = vmatpush1.msra.mxu0 0.0
    %227 = vmatprep.subr.mxu0 0.0
    %228 = vmatpush1.msra.mxu0 0.0
    %229 = vmatprep.subr.mxu0 0.0
    %230 = vmatpush1.msra.mxu0 0.0
    %231 = vmatprep.subr.mxu0 0.0
    %232 = vmatpush1.msra.mxu0 0.0
    %233 = vmatprep.subr.mxu0 0.0
    %234 = vmatpush1.msra.mxu0 0.0
    %235 = vmatprep.subr.mxu0 0.0
    %236 = vmatpush1.msra.mxu0 0.0
    %237 = vmatprep.subr.mxu0 0.0
    %238 = vmatpush1.msra.mxu0 0.0
    %239 = vmatprep.subr.mxu0 0.0
    %240 = vmatpush1.msra.mxu0 0.0
    %241 = vmatprep.subr.mxu0 0.0
    %242 = vmatpush1.msra.mxu0 0.0
    %243 = vmatprep.subr.mxu0 0.0
    %244 = vmatpush1.msra.mxu0 0.0
    %245 = vmatprep.subr.mxu0 0.0
    %246 = vmatpush1.msra.mxu0 0.0
    %247 = vmatprep.subr.mxu0 0.0
    %248 = vmatpush1.msra.mxu0 0.0
    %249 = vmatprep.subr.mxu0 0.0
    %250 = vmatpush1.msra.mxu0 0.0
    %251 = vmatprep.subr.mxu0 0.0
    %252 = vmatpush1.msra.mxu0 0.0
    %253 = vmatprep.subr.mxu0 0.0
    %254 = vmatpush1.msra.mxu0 0.0
    %255 = vmatprep.subr.mxu0 0.0
    %256 = vmatpush1.msra.mxu0 0.0
    %257 = vmatprep.subr.mxu0 0.0
    %258 = vmatpush1.msra.mxu0 0.0
    %259 = vmatprep.subr.mxu0 0.0
    %260 = vmatpush1.msra.mxu0 0.0
    %261 = vmatprep.subr.mxu0 0.0
    %262 = vmatpush1.msra.mxu0 0.0
    %263 = vmatprep.subr.mxu0 0.0
    %264 = vmatpush1.msra.mxu0 0.0
    %265 = vmatprep.mubr.f32.mxu0 0.0
    %266 = vmatmul.mubr.f32.gmra.mrb[0].mxu0 %v196
    %v267 = vpop.f32.mrb[0].mxu0
    %v268 = vadd.f32 0.0, %v267
    %v269 = vpop.f32.mrb[0].mxu0
    %270 = vmatprep.mubr.f32.mxu0 0.0
    %271 = vmatmul.mubr.f32.gmra.mrb[0].mxu0 %v199
    %v272 = vpop.f32.mrb[0].mxu0
    %v273 = vadd.f32 0.0, %v272
    %v274 = vpop.f32.mrb[0].mxu0
    %275 = vdwg.mxu0
    %v276 = vlaneseq
    %v277 = vshrl.u32 %v276, 7
    %v278 = vsub.s32 1, %v277
    %v279 = vrot.slane %v100, %v278
    %v280 = vadd.f32 %v268, %v279
    %v281 = vadd.f32 %v273, %v279
    %v282 = vlaneseq
    %v283 = vshrl.u32 %v282, 7
    %v284 = vsub.s32 2, %v283
    %v285 = vrot.slane %v100, %v284
    %287 = vrot.lane.b32.xlu0 %v285, 32
    %v288 = vpop.permute.xlu0 %287
    %v290 = vadd.f32 %v268, %v288
    %v291 = vadd.f32 %v273, %v288
    %v294 = vcombine.high %v183, %v183
    %v296 = vunpack.c.l.s4 1966171168
    %v297 = vunpack.c.0.s8 %v296
    %v298 = vlaneseq
    %v299 = vshrl.u32 %v298, 7
    %v300 = vsub.s32 %v297, %v299
    %v301 = vrot.slane %v183, %v300
    %v303 = vunpack.c.l.s4 1966171168
    %v304 = vunpack.c.0.s8 %v303
    %v305 = vlaneseq
    %v306 = vshrl.u32 %v305, 7
    %v307 = vsub.s32 %v304, %v306
    %v308 = vrot.slane %v294, %v307
    %v309 = vcombine.high %v301, %v301
    %v310 = vcombine.high %v308, %v308
    %v312 = vunpack.c.l.s4 1966171168
    %v313 = vunpack.c.0.s8 %v312
    %v314 = vlaneseq
    %v315 = vshrl.u32 %v314, 7
    %v316 = vsub.s32 %v313, %v315
    %v317 = vrot.slane %v301, %v316
    %v319 = vunpack.c.l.s4 1966171168
    %v320 = vunpack.c.0.s8 %v319
    %v321 = vlaneseq
    %v322 = vshrl.u32 %v321, 7
    %v323 = vsub.s32 %v320, %v322
    %v324 = vrot.slane %v308, %v323
    %v326 = vunpack.c.l.s4 1966171168
    %v327 = vunpack.c.0.s8 %v326
    %v328 = vlaneseq
    %v329 = vshrl.u32 %v328, 7
    %v330 = vsub.s32 %v327, %v329
    %v331 = vrot.slane %v309, %v330
    %v333 = vunpack.c.l.s4 1966171168
    %v334 = vunpack.c.0.s8 %v333
    %v335 = vlaneseq
    %v336 = vshrl.u32 %v335, 7
    %v337 = vsub.s32 %v334, %v336
    %v338 = vrot.slane %v310, %v337
    %v339 = vcombine.high %v317, %v317
    %v340 = vcombine.high %v324, %v324
    %v341 = vcombine.high %v331, %v331
    %v342 = vcombine.high %v338, %v338
    %v343 = vcombine.high %v188, %v188
    %v345 = vunpack.c.l.s4 1966171168
    %v346 = vunpack.c.0.s8 %v345
    %v347 = vlaneseq
    %v348 = vshrl.u32 %v347, 7
    %v349 = vsub.s32 %v346, %v348
    %v350 = vrot.slane %v188, %v349
    %v352 = vunpack.c.l.s4 1966171168
    %v353 = vunpack.c.0.s8 %v352
    %v354 = vlaneseq
    %v355 = vshrl.u32 %v354, 7
    %v356 = vsub.s32 %v353, %v355
    %v357 = vrot.slane %v343, %v356
    %v358 = vcombine.high %v350, %v350
    %v359 = vcombine.high %v357, %v357
    %v361 = vunpack.c.l.s4 1966171168
    %v362 = vunpack.c.0.s8 %v361
    %v363 = vlaneseq
    %v364 = vshrl.u32 %v363, 7
    %v365 = vsub.s32 %v362, %v364
    %v366 = vrot.slane %v350, %v365
    %v368 = vunpack.c.l.s4 1966171168
    %v369 = vunpack.c.0.s8 %v368
    %v370 = vlaneseq
    %v371 = vshrl.u32 %v370, 7
    %v372 = vsub.s32 %v369, %v371
    %v373 = vrot.slane %v357, %v372
    %v375 = vunpack.c.l.s4 1966171168
    %v376 = vunpack.c.0.s8 %v375
    %v377 = vlaneseq
    %v378 = vshrl.u32 %v377, 7
    %v379 = vsub.s32 %v376, %v378
    %v380 = vrot.slane %v358, %v379
    %v382 = vunpack.c.l.s4 1966171168
    %v383 = vunpack.c.0.s8 %v382
    %v384 = vlaneseq
    %v385 = vshrl.u32 %v384, 7
    %v386 = vsub.s32 %v383, %v385
    %v387 = vrot.slane %v359, %v386
    %v388 = vcombine.high %v366, %v366
    %v389 = vcombine.high %v373, %v373
    %v390 = vcombine.high %v380, %v380
    %v391 = vcombine.high %v387, %v387
    %v392 = vlaneseq
    %v393 = vshrl.u32 %v392, 7
    %v394 = vsub.s32 0, %v393
    %v395 = vrot.slane %v317, %v394
    %v396 = vlaneseq
    %v397 = vshrl.u32 %v396, 7
    %v398 = vsub.s32 0, %v397
    %v399 = vrot.slane %v331, %v398
    %v400 = vlaneseq
    %v401 = vshrl.u32 %v400, 7
    %v402 = vsub.s32 0, %v401
    %v403 = vrot.slane %v339, %v402
    %v404 = vlaneseq
    %v405 = vshrl.u32 %v404, 7
    %v406 = vsub.s32 0, %v405
    %v407 = vrot.slane %v341, %v406
    %v408 = vlaneseq
    %v409 = vshrl.u32 %v408, 7
    %v410 = vsub.s32 0, %v409
    %v411 = vrot.slane %v324, %v410
    %v412 = vlaneseq
    %v413 = vshrl.u32 %v412, 7
    %v414 = vsub.s32 0, %v413
    %v415 = vrot.slane %v338, %v414
    %v416 = vlaneseq
    %v417 = vshrl.u32 %v416, 7
    %v418 = vsub.s32 0, %v417
    %v419 = vrot.slane %v340, %v418
    %v420 = vlaneseq
    %v421 = vshrl.u32 %v420, 7
    %v422 = vsub.s32 0, %v421
    %v423 = vrot.slane %v342, %v422
    %v424 = vlaneseq
    %v425 = vshrl.u32 %v424, 7
    %v426 = vsub.s32 0, %v425
    %v427 = vrot.slane %v366, %v426
    %v428 = vlaneseq
    %v429 = vshrl.u32 %v428, 7
    %v430 = vsub.s32 0, %v429
    %v431 = vrot.slane %v380, %v430
    %v432 = vlaneseq
    %v433 = vshrl.u32 %v432, 7
    %v434 = vsub.s32 0, %v433
    %v435 = vrot.slane %v388, %v434
    %v436 = vlaneseq
    %v437 = vshrl.u32 %v436, 7
    %v438 = vsub.s32 0, %v437
    %v439 = vrot.slane %v390, %v438
    %v440 = vlaneseq
    %v441 = vshrl.u32 %v440, 7
    %v442 = vsub.s32 0, %v441
    %v443 = vrot.slane %v373, %v442
    %v444 = vlaneseq
    %v445 = vshrl.u32 %v444, 7
    %v446 = vsub.s32 0, %v445
    %v447 = vrot.slane %v387, %v446
    %v448 = vlaneseq
    %v449 = vshrl.u32 %v448, 7
    %v450 = vsub.s32 0, %v449
    %v451 = vrot.slane %v389, %v450
    %v452 = vlaneseq
    %v453 = vshrl.u32 %v452, 7
    %v454 = vsub.s32 0, %v453
    %v455 = vrot.slane %v391, %v454
    %v472 = vmul.f32 %v395, %v280
    %v473 = vmul.f32 %v399, %v280
    %v474 = vmul.f32 %v403, %v280
    %v475 = vmul.f32 %v407, %v280
    %v476 = vmul.f32 %v411, %v280
    %v477 = vmul.f32 %v415, %v280
    %v478 = vmul.f32 %v419, %v280
    %v479 = vmul.f32 %v423, %v280
    %v480 = vmul.f32 %v427, %v281
    %v481 = vmul.f32 %v431, %v281
    %v482 = vmul.f32 %v435, %v281
    %v483 = vmul.f32 %v439, %v281
    %v484 = vmul.f32 %v443, %v281
    %v485 = vmul.f32 %v447, %v281
    %v486 = vmul.f32 %v451, %v281
    %v487 = vmul.f32 %v455, %v281
    %504 = vrot.lane.b32.xlu0 %v472, 120
    %v505 = vpop.permute.xlu0 %504
    %506 = vrot.lane.b32.xlu0 %v473, 120
    %v507 = vpop.permute.xlu0 %506
    %508 = vrot.lane.b32.xlu0 %v474, 120
    %v509 = vpop.permute.xlu0 %508
    %510 = vrot.lane.b32.xlu0 %v475, 120
    %v511 = vpop.permute.xlu0 %510
    %512 = vrot.lane.b32.xlu0 %v476, 120
    %v513 = vpop.permute.xlu0 %512
    %514 = vrot.lane.b32.xlu0 %v477, 120
    %v515 = vpop.permute.xlu0 %514
    %516 = vrot.lane.b32.xlu0 %v478, 120
    %v517 = vpop.permute.xlu0 %516
    %518 = vrot.lane.b32.xlu0 %v479, 120
    %v519 = vpop.permute.xlu0 %518
    %520 = vrot.lane.b32.xlu0 %v480, 120
    %v521 = vpop.permute.xlu0 %520
    %522 = vrot.lane.b32.xlu0 %v481, 120
    %v523 = vpop.permute.xlu0 %522
    %524 = vrot.lane.b32.xlu0 %v482, 120
    %v525 = vpop.permute.xlu0 %524
    %526 = vrot.lane.b32.xlu0 %v483, 120
    %v527 = vpop.permute.xlu0 %526
    %528 = vrot.lane.b32.xlu0 %v484, 120
    %v529 = vpop.permute.xlu0 %528
    %530 = vrot.lane.b32.xlu0 %v485, 120
    %v531 = vpop.permute.xlu0 %530
    %532 = vrot.lane.b32.xlu0 %v486, 120
    %v533 = vpop.permute.xlu0 %532
    %534 = vrot.lane.b32.xlu0 %v487, 120
    %v535 = vpop.permute.xlu0 %534
    %v552 = vadd.f32 %v472, %v505
    %v553 = vadd.f32 %v473, %v507
    %v554 = vadd.f32 %v474, %v509
    %v555 = vadd.f32 %v475, %v511
    %v556 = vadd.f32 %v476, %v513
    %v557 = vadd.f32 %v477, %v515
    %v558 = vadd.f32 %v478, %v517
    %v559 = vadd.f32 %v479, %v519
    %v560 = vadd.f32 %v480, %v521
    %v561 = vadd.f32 %v481, %v523
    %v562 = vadd.f32 %v482, %v525
    %v563 = vadd.f32 %v483, %v527
    %v564 = vadd.f32 %v484, %v529
    %v565 = vadd.f32 %v485, %v531
    %v566 = vadd.f32 %v486, %v533
    %v567 = vadd.f32 %v487, %v535
    %568 = vrot.lane.b32.xlu0 %v472, 112
    %v569 = vpop.permute.xlu0 %568
    %570 = vrot.lane.b32.xlu0 %v473, 112
    %v571 = vpop.permute.xlu0 %570
    %572 = vrot.lane.b32.xlu0 %v474, 112
    %v573 = vpop.permute.xlu0 %572
    %574 = vrot.lane.b32.xlu0 %v475, 112
    %v575 = vpop.permute.xlu0 %574
    %576 = vrot.lane.b32.xlu0 %v476, 112
    %v577 = vpop.permute.xlu0 %576
    %578 = vrot.lane.b32.xlu0 %v477, 112
    %v579 = vpop.permute.xlu0 %578
    %580 = vrot.lane.b32.xlu0 %v478, 112
    %v581 = vpop.permute.xlu0 %580
    %582 = vrot.lane.b32.xlu0 %v479, 112
    %v583 = vpop.permute.xlu0 %582
    %584 = vrot.lane.b32.xlu0 %v480, 112
    %v585 = vpop.permute.xlu0 %584
    %586 = vrot.lane.b32.xlu0 %v481, 112
    %v587 = vpop.permute.xlu0 %586
    %588 = vrot.lane.b32.xlu0 %v482, 112
    %v589 = vpop.permute.xlu0 %588
    %590 = vrot.lane.b32.xlu0 %v483, 112
    %v591 = vpop.permute.xlu0 %590
    %592 = vrot.lane.b32.xlu0 %v484, 112
    %v593 = vpop.permute.xlu0 %592
    %594 = vrot.lane.b32.xlu0 %v485, 112
    %v595 = vpop.permute.xlu0 %594
    %596 = vrot.lane.b32.xlu0 %v486, 112
    %v597 = vpop.permute.xlu0 %596
    %598 = vrot.lane.b32.xlu0 %v487, 112
    %v599 = vpop.permute.xlu0 %598
    %v616 = vadd.f32 %v552, %v569
    %v617 = vadd.f32 %v553, %v571
    %v618 = vadd.f32 %v554, %v573
    %v619 = vadd.f32 %v555, %v575
    %v620 = vadd.f32 %v556, %v577
    %v621 = vadd.f32 %v557, %v579
    %v622 = vadd.f32 %v558, %v581
    %v623 = vadd.f32 %v559, %v583
    %v624 = vadd.f32 %v560, %v585
    %v625 = vadd.f32 %v561, %v587
    %v626 = vadd.f32 %v562, %v589
    %v627 = vadd.f32 %v563, %v591
    %v628 = vadd.f32 %v564, %v593
    %v629 = vadd.f32 %v565, %v595
    %v630 = vadd.f32 %v566, %v597
    %v631 = vadd.f32 %v567, %v599
    %632 = vrot.lane.b32.xlu0 %v472, 104
    %v633 = vpop.permute.xlu0 %632
    %634 = vrot.lane.b32.xlu0 %v473, 104
    %v635 = vpop.permute.xlu0 %634
    %636 = vrot.lane.b32.xlu0 %v474, 104
    %v637 = vpop.permute.xlu0 %636
    %638 = vrot.lane.b32.xlu0 %v475, 104
    %v639 = vpop.permute.xlu0 %638
    %640 = vrot.lane.b32.xlu0 %v476, 104
    %v641 = vpop.permute.xlu0 %640
    %642 = vrot.lane.b32.xlu0 %v477, 104
    %v643 = vpop.permute.xlu0 %642
    %644 = vrot.lane.b32.xlu0 %v478, 104
    %v645 = vpop.permute.xlu0 %644
    %646 = vrot.lane.b32.xlu0 %v479, 104
    %v647 = vpop.permute.xlu0 %646
    %648 = vrot.lane.b32.xlu0 %v480, 104
    %v649 = vpop.permute.xlu0 %648
    %650 = vrot.lane.b32.xlu0 %v481, 104
    %v651 = vpop.permute.xlu0 %650
    %652 = vrot.lane.b32.xlu0 %v482, 104
    %v653 = vpop.permute.xlu0 %652
    %654 = vrot.lane.b32.xlu0 %v483, 104
    %v655 = vpop.permute.xlu0 %654
    %656 = vrot.lane.b32.xlu0 %v484, 104
    %v657 = vpop.permute.xlu0 %656
    %658 = vrot.lane.b32.xlu0 %v485, 104
    %v659 = vpop.permute.xlu0 %658
    %660 = vrot.lane.b32.xlu0 %v486, 104
    %v661 = vpop.permute.xlu0 %660
    %662 = vrot.lane.b32.xlu0 %v487, 104
    %v663 = vpop.permute.xlu0 %662
    %v680 = vadd.f32 %v616, %v633
    %v681 = vadd.f32 %v617, %v635
    %v682 = vadd.f32 %v618, %v637
    %v683 = vadd.f32 %v619, %v639
    %v684 = vadd.f32 %v620, %v641
    %v685 = vadd.f32 %v621, %v643
    %v686 = vadd.f32 %v622, %v645
    %v687 = vadd.f32 %v623, %v647
    %v688 = vadd.f32 %v624, %v649
    %v689 = vadd.f32 %v625, %v651
    %v690 = vadd.f32 %v626, %v653
    %v691 = vadd.f32 %v627, %v655
    %v692 = vadd.f32 %v628, %v657
    %v693 = vadd.f32 %v629, %v659
    %v694 = vadd.f32 %v630, %v661
    %v695 = vadd.f32 %v631, %v663
    %vm696 = vcmask 64512
    %v697 = vsel %vm696, %v680, -inf
    %v698 = vrot.slane %v697, 4
    %v699 = vmax.f32 %v697, %v698
    %v700 = vrot.slane %v699, 2
    %v701 = vmax.f32 %v699, %v700
    %v702 = vrot.slane %v701, 1
    %v703 = vmax.f32 %v701, %v702
    %v704 = vsel %vm696, %v681, -inf
    %v705 = vrot.slane %v704, 4
    %v706 = vmax.f32 %v704, %v705
    %v707 = vrot.slane %v706, 2
    %v708 = vmax.f32 %v706, %v707
    %v709 = vrot.slane %v708, 1
    %v710 = vmax.f32 %v708, %v709
    %v711 = vsel %vm696, %v682, -inf
    %v712 = vrot.slane %v711, 4
    %v713 = vmax.f32 %v711, %v712
    %v714 = vrot.slane %v713, 2
    %v715 = vmax.f32 %v713, %v714
    %v716 = vrot.slane %v715, 1
    %v717 = vmax.f32 %v715, %v716
    %v718 = vsel %vm696, %v683, -inf
    %v719 = vrot.slane %v718, 4
    %v720 = vmax.f32 %v718, %v719
    %v721 = vrot.slane %v720, 2
    %v722 = vmax.f32 %v720, %v721
    %v723 = vrot.slane %v722, 1
    %v724 = vmax.f32 %v722, %v723
    %v725 = vsel %vm696, %v684, -inf
    %v726 = vrot.slane %v725, 4
    %v727 = vmax.f32 %v725, %v726
    %v728 = vrot.slane %v727, 2
    %v729 = vmax.f32 %v727, %v728
    %v730 = vrot.slane %v729, 1
    %v731 = vmax.f32 %v729, %v730
    %v732 = vsel %vm696, %v685, -inf
    %v733 = vrot.slane %v732, 4
    %v734 = vmax.f32 %v732, %v733
    %v735 = vrot.slane %v734, 2
    %v736 = vmax.f32 %v734, %v735
    %v737 = vrot.slane %v736, 1
    %v738 = vmax.f32 %v736, %v737
    %v739 = vsel %vm696, %v686, -inf
    %v740 = vrot.slane %v739, 4
    %v741 = vmax.f32 %v739, %v740
    %v742 = vrot.slane %v741, 2
    %v743 = vmax.f32 %v741, %v742
    %v744 = vrot.slane %v743, 1
    %v745 = vmax.f32 %v743, %v744
    %v746 = vsel %vm696, %v687, -inf
    %v747 = vrot.slane %v746, 4
    %v748 = vmax.f32 %v746, %v747
    %v749 = vrot.slane %v748, 2
    %v750 = vmax.f32 %v748, %v749
    %v751 = vrot.slane %v750, 1
    %v752 = vmax.f32 %v750, %v751
    %v753 = vsel %vm696, %v688, -inf
    %v754 = vrot.slane %v753, 4
    %v755 = vmax.f32 %v753, %v754
    %v756 = vrot.slane %v755, 2
    %v757 = vmax.f32 %v755, %v756
    %v758 = vrot.slane %v757, 1
    %v759 = vmax.f32 %v757, %v758
    %v760 = vsel %vm696, %v689, -inf
    %v761 = vrot.slane %v760, 4
    %v762 = vmax.f32 %v760, %v761
    %v763 = vrot.slane %v762, 2
    %v764 = vmax.f32 %v762, %v763
    %v765 = vrot.slane %v764, 1
    %v766 = vmax.f32 %v764, %v765
    %v767 = vsel %vm696, %v690, -inf
    %v768 = vrot.slane %v767, 4
    %v769 = vmax.f32 %v767, %v768
    %v770 = vrot.slane %v769, 2
    %v771 = vmax.f32 %v769, %v770
    %v772 = vrot.slane %v771, 1
    %v773 = vmax.f32 %v771, %v772
    %v774 = vsel %vm696, %v691, -inf
    %v775 = vrot.slane %v774, 4
    %v776 = vmax.f32 %v774, %v775
    %v777 = vrot.slane %v776, 2
    %v778 = vmax.f32 %v776, %v777
    %v779 = vrot.slane %v778, 1
    %v780 = vmax.f32 %v778, %v779
    %v781 = vsel %vm696, %v692, -inf
    %v782 = vrot.slane %v781, 4
    %v783 = vmax.f32 %v781, %v782
    %v784 = vrot.slane %v783, 2
    %v785 = vmax.f32 %v783, %v784
    %v786 = vrot.slane %v785, 1
    %v787 = vmax.f32 %v785, %v786
    %v788 = vsel %vm696, %v693, -inf
    %v789 = vrot.slane %v788, 4
    %v790 = vmax.f32 %v788, %v789
    %v791 = vrot.slane %v790, 2
    %v792 = vmax.f32 %v790, %v791
    %v793 = vrot.slane %v792, 1
    %v794 = vmax.f32 %v792, %v793
    %v795 = vsel %vm696, %v694, -inf
    %v796 = vrot.slane %v795, 4
    %v797 = vmax.f32 %v795, %v796
    %v798 = vrot.slane %v797, 2
    %v799 = vmax.f32 %v797, %v798
    %v800 = vrot.slane %v799, 1
    %v801 = vmax.f32 %v799, %v800
    %v802 = vsel %vm696, %v695, -inf
    %v803 = vrot.slane %v802, 4
    %v804 = vmax.f32 %v802, %v803
    %v805 = vrot.slane %v804, 2
    %v806 = vmax.f32 %v804, %v805
    %v807 = vrot.slane %v806, 1
    %v808 = vmax.f32 %v806, %v807
    %v809 = vsub.f32 %v680, %v703
    %v810 = vsub.f32 %v681, %v710
    %v811 = vsub.f32 %v682, %v717
    %v812 = vsub.f32 %v683, %v724
    %v813 = vsub.f32 %v684, %v731
    %v814 = vsub.f32 %v685, %v738
    %v815 = vsub.f32 %v686, %v745
    %v816 = vsub.f32 %v687, %v752
    %v817 = vsub.f32 %v688, %v759
    %v818 = vsub.f32 %v689, %v766
    %v819 = vsub.f32 %v690, %v773
    %v820 = vsub.f32 %v691, %v780
    %v821 = vsub.f32 %v692, %v787
    %v822 = vsub.f32 %v693, %v794
    %v823 = vsub.f32 %v694, %v801
    %v824 = vsub.f32 %v695, %v808
    %v825 = vmul.f32 %v809, 1.442695
    %v826 = vpow.pop %v825
    %v827 = vmul.f32 %v810, 1.442695
    %v828 = vpow.pop %v827
    %v829 = vmul.f32 %v811, 1.442695
    %v830 = vpow.pop %v829
    %v831 = vmul.f32 %v812, 1.442695
    %v832 = vpow.pop %v831
    %v833 = vmul.f32 %v813, 1.442695
    %v834 = vpow.pop %v833
    %v835 = vmul.f32 %v814, 1.442695
    %v836 = vpow.pop %v835
    %v837 = vmul.f32 %v815, 1.442695
    %v838 = vpow.pop %v837
    %v839 = vmul.f32 %v816, 1.442695
    %v840 = vpow.pop %v839
    %v841 = vmul.f32 %v817, 1.442695
    %v842 = vpow.pop %v841
    %v843 = vmul.f32 %v818, 1.442695
    %v844 = vpow.pop %v843
    %v845 = vmul.f32 %v819, 1.442695
    %v846 = vpow.pop %v845
    %v847 = vmul.f32 %v820, 1.442695
    %v848 = vpow.pop %v847
    %v849 = vmul.f32 %v821, 1.442695
    %v850 = vpow.pop %v849
    %v851 = vmul.f32 %v822, 1.442695
    %v852 = vpow.pop %v851
    %v853 = vmul.f32 %v823, 1.442695
    %v854 = vpow.pop %v853
    %v855 = vmul.f32 %v824, 1.442695
    %v856 = vpow.pop %v855
    %v857 = vsel %vm696, %v826, 0.0
    %v858 = vrot.slane %v857, 4
    %v859 = vadd.f32 %v857, %v858
    %v860 = vrot.slane %v859, 2
    %v861 = vadd.f32 %v859, %v860
    %v862 = vrot.slane %v861, 1
    %v863 = vadd.f32 %v861, %v862
    %v864 = vsel %vm696, %v828, 0.0
    %v865 = vrot.slane %v864, 4
    %v866 = vadd.f32 %v864, %v865
    %v867 = vrot.slane %v866, 2
    %v868 = vadd.f32 %v866, %v867
    %v869 = vrot.slane %v868, 1
    %v870 = vadd.f32 %v868, %v869
    %v871 = vsel %vm696, %v830, 0.0
    %v872 = vrot.slane %v871, 4
    %v873 = vadd.f32 %v871, %v872
    %v874 = vrot.slane %v873, 2
    %v875 = vadd.f32 %v873, %v874
    %v876 = vrot.slane %v875, 1
    %v877 = vadd.f32 %v875, %v876
    %v878 = vsel %vm696, %v832, 0.0
    %v879 = vrot.slane %v878, 4
    %v880 = vadd.f32 %v878, %v879
    %v881 = vrot.slane %v880, 2
    %v882 = vadd.f32 %v880, %v881
    %v883 = vrot.slane %v882, 1
    %v884 = vadd.f32 %v882, %v883
    %v885 = vsel %vm696, %v834, 0.0
    %v886 = vrot.slane %v885, 4
    %v887 = vadd.f32 %v885, %v886
    %v888 = vrot.slane %v887, 2
    %v889 = vadd.f32 %v887, %v888
    %v890 = vrot.slane %v889, 1
    %v891 = vadd.f32 %v889, %v890
    %v892 = vsel %vm696, %v836, 0.0
    %v893 = vrot.slane %v892, 4
    %v894 = vadd.f32 %v892, %v893
    %v895 = vrot.slane %v894, 2
    %v896 = vadd.f32 %v894, %v895
    %v897 = vrot.slane %v896, 1
    %v898 = vadd.f32 %v896, %v897
    %v899 = vsel %vm696, %v838, 0.0
    %v900 = vrot.slane %v899, 4
    %v901 = vadd.f32 %v899, %v900
    %v902 = vrot.slane %v901, 2
    %v903 = vadd.f32 %v901, %v902
    %v904 = vrot.slane %v903, 1
    %v905 = vadd.f32 %v903, %v904
    %v906 = vsel %vm696, %v840, 0.0
    %v907 = vrot.slane %v906, 4
    %v908 = vadd.f32 %v906, %v907
    %v909 = vrot.slane %v908, 2
    %v910 = vadd.f32 %v908, %v909
    %v911 = vrot.slane %v910, 1
    %v912 = vadd.f32 %v910, %v911
    %v913 = vsel %vm696, %v842, 0.0
    %v914 = vrot.slane %v913, 4
    %v915 = vadd.f32 %v913, %v914
    %v916 = vrot.slane %v915, 2
    %v917 = vadd.f32 %v915, %v916
    %v918 = vrot.slane %v917, 1
    %v919 = vadd.f32 %v917, %v918
    %v920 = vsel %vm696, %v844, 0.0
    %v921 = vrot.slane %v920, 4
    %v922 = vadd.f32 %v920, %v921
    %v923 = vrot.slane %v922, 2
    %v924 = vadd.f32 %v922, %v923
    %v925 = vrot.slane %v924, 1
    %v926 = vadd.f32 %v924, %v925
    %v927 = vsel %vm696, %v846, 0.0
    %v928 = vrot.slane %v927, 4
    %v929 = vadd.f32 %v927, %v928
    %v930 = vrot.slane %v929, 2
    %v931 = vadd.f32 %v929, %v930
    %v932 = vrot.slane %v931, 1
    %v933 = vadd.f32 %v931, %v932
    %v934 = vsel %vm696, %v848, 0.0
    %v935 = vrot.slane %v934, 4
    %v936 = vadd.f32 %v934, %v935
    %v937 = vrot.slane %v936, 2
    %v938 = vadd.f32 %v936, %v937
    %v939 = vrot.slane %v938, 1
    %v940 = vadd.f32 %v938, %v939
    %v941 = vsel %vm696, %v850, 0.0
    %v942 = vrot.slane %v941, 4
    %v943 = vadd.f32 %v941, %v942
    %v944 = vrot.slane %v943, 2
    %v945 = vadd.f32 %v943, %v944
    %v946 = vrot.slane %v945, 1
    %v947 = vadd.f32 %v945, %v946
    %v948 = vsel %vm696, %v852, 0.0
    %v949 = vrot.slane %v948, 4
    %v950 = vadd.f32 %v948, %v949
    %v951 = vrot.slane %v950, 2
    %v952 = vadd.f32 %v950, %v951
    %v953 = vrot.slane %v952, 1
    %v954 = vadd.f32 %v952, %v953
    %v955 = vsel %vm696, %v854, 0.0
    %v956 = vrot.slane %v955, 4
    %v957 = vadd.f32 %v955, %v956
    %v958 = vrot.slane %v957, 2
    %v959 = vadd.f32 %v957, %v958
    %v960 = vrot.slane %v959, 1
    %v961 = vadd.f32 %v959, %v960
    %v962 = vsel %vm696, %v856, 0.0
    %v963 = vrot.slane %v962, 4
    %v964 = vadd.f32 %v962, %v963
    %v965 = vrot.slane %v964, 2
    %v966 = vadd.f32 %v964, %v965
    %v967 = vrot.slane %v966, 1
    %v968 = vadd.f32 %v966, %v967
    %v969 = vrcp.pop %v863
    %v970 = vmul.f32 1.0, %v969
    %v971 = vrcp.pop %v870
    %v972 = vmul.f32 1.0, %v971
    %v973 = vrcp.pop %v877
    %v974 = vmul.f32 1.0, %v973
    %v975 = vrcp.pop %v884
    %v976 = vmul.f32 1.0, %v975
    %v977 = vrcp.pop %v891
    %v978 = vmul.f32 1.0, %v977
    %v979 = vrcp.pop %v898
    %v980 = vmul.f32 1.0, %v979
    %v981 = vrcp.pop %v905
    %v982 = vmul.f32 1.0, %v981
    %v983 = vrcp.pop %v912
    %v984 = vmul.f32 1.0, %v983
    %v985 = vrcp.pop %v919
    %v986 = vmul.f32 1.0, %v985
    %v987 = vrcp.pop %v926
    %v988 = vmul.f32 1.0, %v987
    %v989 = vrcp.pop %v933
    %v990 = vmul.f32 1.0, %v989
    %v991 = vrcp.pop %v940
    %v992 = vmul.f32 1.0, %v991
    %v993 = vrcp.pop %v947
    %v994 = vmul.f32 1.0, %v993
    %v995 = vrcp.pop %v954
    %v996 = vmul.f32 1.0, %v995
    %v997 = vrcp.pop %v961
    %v998 = vmul.f32 1.0, %v997
    %v999 = vrcp.pop %v968
    %v1000 = vmul.f32 1.0, %v999
    %v1001 = vmul.f32 %v826, %v970
    %v1002 = vmul.f32 %v828, %v972
    %v1003 = vmul.f32 %v830, %v974
    %v1004 = vmul.f32 %v832, %v976
    %v1005 = vmul.f32 %v834, %v978
    %v1006 = vmul.f32 %v836, %v980
    %v1007 = vmul.f32 %v838, %v982
    %v1008 = vmul.f32 %v840, %v984
    %v1009 = vmul.f32 %v842, %v986
    %v1010 = vmul.f32 %v844, %v988
    %v1011 = vmul.f32 %v846, %v990
    %v1012 = vmul.f32 %v848, %v992
    %v1013 = vmul.f32 %v850, %v994
    %v1014 = vmul.f32 %v852, %v996
    %v1015 = vmul.f32 %v854, %v998
    %v1016 = vmul.f32 %v856, %v1000
    %1019 = vrot.lane.b32.xlu0 %v290, 96
    %v1020 = vpop.permute.xlu0 %1019
    %1021 = vrot.lane.b32.xlu0 %v291, 96
    %v1022 = vpop.permute.xlu0 %1021
    %v1025 = vmul.f32 %v1001, %v1020
    %v1026 = vmul.f32 %v1002, %v1020
    %v1027 = vmul.f32 %v1003, %v1020
    %v1028 = vmul.f32 %v1004, %v1020
    %v1029 = vmul.f32 %v1005, %v1020
    %v1030 = vmul.f32 %v1006, %v1020
    %v1031 = vmul.f32 %v1007, %v1020
    %v1032 = vmul.f32 %v1008, %v1020
    %v1033 = vmul.f32 %v1009, %v1022
    %v1034 = vmul.f32 %v1010, %v1022
    %v1035 = vmul.f32 %v1011, %v1022
    %v1036 = vmul.f32 %v1012, %v1022
    %v1037 = vmul.f32 %v1013, %v1022
    %v1038 = vmul.f32 %v1014, %v1022
    %v1039 = vmul.f32 %v1015, %v1022
    %v1040 = vmul.f32 %v1016, %v1022
    %v1041 = vsel %vm696, %v1025, 0.0
    %v1042 = vrot.slane %v1041, 4
    %v1043 = vadd.f32 %v1041, %v1042
    %v1044 = vrot.slane %v1043, 2
    %v1045 = vadd.f32 %v1043, %v1044
    %v1046 = vrot.slane %v1045, 1
    %v1047 = vadd.f32 %v1045, %v1046
    %v1048 = vsel %vm696, %v1026, 0.0
    %v1049 = vrot.slane %v1048, 4
    %v1050 = vadd.f32 %v1048, %v1049
    %v1051 = vrot.slane %v1050, 2
    %v1052 = vadd.f32 %v1050, %v1051
    %v1053 = vrot.slane %v1052, 1
    %v1054 = vadd.f32 %v1052, %v1053
    %v1055 = vsel %vm696, %v1027, 0.0
    %v1056 = vrot.slane %v1055, 4
    %v1057 = vadd.f32 %v1055, %v1056
    %v1058 = vrot.slane %v1057, 2
    %v1059 = vadd.f32 %v1057, %v1058
    %v1060 = vrot.slane %v1059, 1
    %v1061 = vadd.f32 %v1059, %v1060
    %v1062 = vsel %vm696, %v1028, 0.0
    %v1063 = vrot.slane %v1062, 4
    %v1064 = vadd.f32 %v1062, %v1063
    %v1065 = vrot.slane %v1064, 2
    %v1066 = vadd.f32 %v1064, %v1065
    %v1067 = vrot.slane %v1066, 1
    %v1068 = vadd.f32 %v1066, %v1067
    %v1069 = vsel %vm696, %v1029, 0.0
    %v1070 = vrot.slane %v1069, 4
    %v1071 = vadd.f32 %v1069, %v1070
    %v1072 = vrot.slane %v1071, 2
    %v1073 = vadd.f32 %v1071, %v1072
    %v1074 = vrot.slane %v1073, 1
    %v1075 = vadd.f32 %v1073, %v1074
    %v1076 = vsel %vm696, %v1030, 0.0
    %v1077 = vrot.slane %v1076, 4
    %v1078 = vadd.f32 %v1076, %v1077
    %v1079 = vrot.slane %v1078, 2
    %v1080 = vadd.f32 %v1078, %v1079
    %v1081 = vrot.slane %v1080, 1
    %v1082 = vadd.f32 %v1080, %v1081
    %v1083 = vsel %vm696, %v1031, 0.0
    %v1084 = vrot.slane %v1083, 4
    %v1085 = vadd.f32 %v1083, %v1084
    %v1086 = vrot.slane %v1085, 2
    %v1087 = vadd.f32 %v1085, %v1086
    %v1088 = vrot.slane %v1087, 1
    %v1089 = vadd.f32 %v1087, %v1088
    %v1090 = vsel %vm696, %v1032, 0.0
    %v1091 = vrot.slane %v1090, 4
    %v1092 = vadd.f32 %v1090, %v1091
    %v1093 = vrot.slane %v1092, 2
    %v1094 = vadd.f32 %v1092, %v1093
    %v1095 = vrot.slane %v1094, 1
    %v1096 = vadd.f32 %v1094, %v1095
    %v1097 = vsel %vm696, %v1033, 0.0
    %v1098 = vrot.slane %v1097, 4
    %v1099 = vadd.f32 %v1097, %v1098
    %v1100 = vrot.slane %v1099, 2
    %v1101 = vadd.f32 %v1099, %v1100
    %v1102 = vrot.slane %v1101, 1
    %v1103 = vadd.f32 %v1101, %v1102
    %v1104 = vsel %vm696, %v1034, 0.0
    %v1105 = vrot.slane %v1104, 4
    %v1106 = vadd.f32 %v1104, %v1105
    %v1107 = vrot.slane %v1106, 2
    %v1108 = vadd.f32 %v1106, %v1107
    %v1109 = vrot.slane %v1108, 1
    %v1110 = vadd.f32 %v1108, %v1109
    %v1111 = vsel %vm696, %v1035, 0.0
    %v1112 = vrot.slane %v1111, 4
    %v1113 = vadd.f32 %v1111, %v1112
    %v1114 = vrot.slane %v1113, 2
    %v1115 = vadd.f32 %v1113, %v1114
    %v1116 = vrot.slane %v1115, 1
    %v1117 = vadd.f32 %v1115, %v1116
    %v1118 = vsel %vm696, %v1036, 0.0
    %v1119 = vrot.slane %v1118, 4
    %v1120 = vadd.f32 %v1118, %v1119
    %v1121 = vrot.slane %v1120, 2
    %v1122 = vadd.f32 %v1120, %v1121
    %v1123 = vrot.slane %v1122, 1
    %v1124 = vadd.f32 %v1122, %v1123
    %v1125 = vsel %vm696, %v1037, 0.0
    %v1126 = vrot.slane %v1125, 4
    %v1127 = vadd.f32 %v1125, %v1126
    %v1128 = vrot.slane %v1127, 2
    %v1129 = vadd.f32 %v1127, %v1128
    %v1130 = vrot.slane %v1129, 1
    %v1131 = vadd.f32 %v1129, %v1130
    %v1132 = vsel %vm696, %v1038, 0.0
    %v1133 = vrot.slane %v1132, 4
    %v1134 = vadd.f32 %v1132, %v1133
    %v1135 = vrot.slane %v1134, 2
    %v1136 = vadd.f32 %v1134, %v1135
    %v1137 = vrot.slane %v1136, 1
    %v1138 = vadd.f32 %v1136, %v1137
    %v1139 = vsel %vm696, %v1039, 0.0
    %v1140 = vrot.slane %v1139, 4
    %v1141 = vadd.f32 %v1139, %v1140
    %v1142 = vrot.slane %v1141, 2
    %v1143 = vadd.f32 %v1141, %v1142
    %v1144 = vrot.slane %v1143, 1
    %v1145 = vadd.f32 %v1143, %v1144
    %v1146 = vsel %vm696, %v1040, 0.0
    %v1147 = vrot.slane %v1146, 4
    %v1148 = vadd.f32 %v1146, %v1147
    %v1149 = vrot.slane %v1148, 2
    %v1150 = vadd.f32 %v1148, %v1149
    %v1151 = vrot.slane %v1150, 1
    %v1152 = vadd.f32 %v1150, %v1151
    %1153 = vrot.lane.b32.xlu0 %v290, 88
    %v1154 = vpop.permute.xlu0 %1153
    %1155 = vrot.lane.b32.xlu0 %v291, 88
    %v1156 = vpop.permute.xlu0 %1155
    %v1159 = vmul.f32 %v1001, %v1154
    %v1160 = vmul.f32 %v1002, %v1154
    %v1161 = vmul.f32 %v1003, %v1154
    %v1162 = vmul.f32 %v1004, %v1154
    %v1163 = vmul.f32 %v1005, %v1154
    %v1164 = vmul.f32 %v1006, %v1154
    %v1165 = vmul.f32 %v1007, %v1154
    %v1166 = vmul.f32 %v1008, %v1154
    %v1167 = vmul.f32 %v1009, %v1156
    %v1168 = vmul.f32 %v1010, %v1156
    %v1169 = vmul.f32 %v1011, %v1156
    %v1170 = vmul.f32 %v1012, %v1156
    %v1171 = vmul.f32 %v1013, %v1156
    %v1172 = vmul.f32 %v1014, %v1156
    %v1173 = vmul.f32 %v1015, %v1156
    %v1174 = vmul.f32 %v1016, %v1156
    %v1175 = vsel %vm696, %v1159, 0.0
    %v1176 = vrot.slane %v1175, 4
    %v1177 = vadd.f32 %v1175, %v1176
    %v1178 = vrot.slane %v1177, 2
    %v1179 = vadd.f32 %v1177, %v1178
    %v1180 = vrot.slane %v1179, 1
    %v1181 = vadd.f32 %v1179, %v1180
    %v1182 = vsel %vm696, %v1160, 0.0
    %v1183 = vrot.slane %v1182, 4
    %v1184 = vadd.f32 %v1182, %v1183
    %v1185 = vrot.slane %v1184, 2
    %v1186 = vadd.f32 %v1184, %v1185
    %v1187 = vrot.slane %v1186, 1
    %v1188 = vadd.f32 %v1186, %v1187
    %v1189 = vsel %vm696, %v1161, 0.0
    %v1190 = vrot.slane %v1189, 4
    %v1191 = vadd.f32 %v1189, %v1190
    %v1192 = vrot.slane %v1191, 2
    %v1193 = vadd.f32 %v1191, %v1192
    %v1194 = vrot.slane %v1193, 1
    %v1195 = vadd.f32 %v1193, %v1194
    %v1196 = vsel %vm696, %v1162, 0.0
    %v1197 = vrot.slane %v1196, 4
    %v1198 = vadd.f32 %v1196, %v1197
    %v1199 = vrot.slane %v1198, 2
    %v1200 = vadd.f32 %v1198, %v1199
    %v1201 = vrot.slane %v1200, 1
    %v1202 = vadd.f32 %v1200, %v1201
    %v1203 = vsel %vm696, %v1163, 0.0
    %v1204 = vrot.slane %v1203, 4
    %v1205 = vadd.f32 %v1203, %v1204
    %v1206 = vrot.slane %v1205, 2
    %v1207 = vadd.f32 %v1205, %v1206
    %v1208 = vrot.slane %v1207, 1
    %v1209 = vadd.f32 %v1207, %v1208
    %v1210 = vsel %vm696, %v1164, 0.0
    %v1211 = vrot.slane %v1210, 4
    %v1212 = vadd.f32 %v1210, %v1211
    %v1213 = vrot.slane %v1212, 2
    %v1214 = vadd.f32 %v1212, %v1213
    %v1215 = vrot.slane %v1214, 1
    %v1216 = vadd.f32 %v1214, %v1215
    %v1217 = vsel %vm696, %v1165, 0.0
    %v1218 = vrot.slane %v1217, 4
    %v1219 = vadd.f32 %v1217, %v1218
    %v1220 = vrot.slane %v1219, 2
    %v1221 = vadd.f32 %v1219, %v1220
    %v1222 = vrot.slane %v1221, 1
    %v1223 = vadd.f32 %v1221, %v1222
    %v1224 = vsel %vm696, %v1166, 0.0
    %v1225 = vrot.slane %v1224, 4
    %v1226 = vadd.f32 %v1224, %v1225
    %v1227 = vrot.slane %v1226, 2
    %v1228 = vadd.f32 %v1226, %v1227
    %v1229 = vrot.slane %v1228, 1
    %v1230 = vadd.f32 %v1228, %v1229
    %v1231 = vsel %vm696, %v1167, 0.0
    %v1232 = vrot.slane %v1231, 4
    %v1233 = vadd.f32 %v1231, %v1232
    %v1234 = vrot.slane %v1233, 2
    %v1235 = vadd.f32 %v1233, %v1234
    %v1236 = vrot.slane %v1235, 1
    %v1237 = vadd.f32 %v1235, %v1236
    %v1238 = vsel %vm696, %v1168, 0.0
    %v1239 = vrot.slane %v1238, 4
    %v1240 = vadd.f32 %v1238, %v1239
    %v1241 = vrot.slane %v1240, 2
    %v1242 = vadd.f32 %v1240, %v1241
    %v1243 = vrot.slane %v1242, 1
    %v1244 = vadd.f32 %v1242, %v1243
    %v1245 = vsel %vm696, %v1169, 0.0
    %v1246 = vrot.slane %v1245, 4
    %v1247 = vadd.f32 %v1245, %v1246
    %v1248 = vrot.slane %v1247, 2
    %v1249 = vadd.f32 %v1247, %v1248
    %v1250 = vrot.slane %v1249, 1
    %v1251 = vadd.f32 %v1249, %v1250
    %v1252 = vsel %vm696, %v1170, 0.0
    %v1253 = vrot.slane %v1252, 4
    %v1254 = vadd.f32 %v1252, %v1253
    %v1255 = vrot.slane %v1254, 2
    %v1256 = vadd.f32 %v1254, %v1255
    %v1257 = vrot.slane %v1256, 1
    %v1258 = vadd.f32 %v1256, %v1257
    %v1259 = vsel %vm696, %v1171, 0.0
    %v1260 = vrot.slane %v1259, 4
    %v1261 = vadd.f32 %v1259, %v1260
    %v1262 = vrot.slane %v1261, 2
    %v1263 = vadd.f32 %v1261, %v1262
    %v1264 = vrot.slane %v1263, 1
    %v1265 = vadd.f32 %v1263, %v1264
    %v1266 = vsel %vm696, %v1172, 0.0
    %v1267 = vrot.slane %v1266, 4
    %v1268 = vadd.f32 %v1266, %v1267
    %v1269 = vrot.slane %v1268, 2
    %v1270 = vadd.f32 %v1268, %v1269
    %v1271 = vrot.slane %v1270, 1
    %v1272 = vadd.f32 %v1270, %v1271
    %v1273 = vsel %vm696, %v1173, 0.0
    %v1274 = vrot.slane %v1273, 4
    %v1275 = vadd.f32 %v1273, %v1274
    %v1276 = vrot.slane %v1275, 2
    %v1277 = vadd.f32 %v1275, %v1276
    %v1278 = vrot.slane %v1277, 1
    %v1279 = vadd.f32 %v1277, %v1278
    %v1280 = vsel %vm696, %v1174, 0.0
    %v1281 = vrot.slane %v1280, 4
    %v1282 = vadd.f32 %v1280, %v1281
    %v1283 = vrot.slane %v1282, 2
    %v1284 = vadd.f32 %v1282, %v1283
    %v1285 = vrot.slane %v1284, 1
    %v1286 = vadd.f32 %v1284, %v1285
    %1287 = vrot.lane.b32.xlu0 %v290, 80
    %v1288 = vpop.permute.xlu0 %1287
    %1289 = vrot.lane.b32.xlu0 %v291, 80
    %v1290 = vpop.permute.xlu0 %1289
    %v1293 = vmul.f32 %v1001, %v1288
    %v1294 = vmul.f32 %v1002, %v1288
    %v1295 = vmul.f32 %v1003, %v1288
    %v1296 = vmul.f32 %v1004, %v1288
    %v1297 = vmul.f32 %v1005, %v1288
    %v1298 = vmul.f32 %v1006, %v1288
    %v1299 = vmul.f32 %v1007, %v1288
    %v1300 = vmul.f32 %v1008, %v1288
    %v1301 = vmul.f32 %v1009, %v1290
    %v1302 = vmul.f32 %v1010, %v1290
    %v1303 = vmul.f32 %v1011, %v1290
    %v1304 = vmul.f32 %v1012, %v1290
    %v1305 = vmul.f32 %v1013, %v1290
    %v1306 = vmul.f32 %v1014, %v1290
    %v1307 = vmul.f32 %v1015, %v1290
    %v1308 = vmul.f32 %v1016, %v1290
    %v1309 = vsel %vm696, %v1293, 0.0
    %v1310 = vrot.slane %v1309, 4
    %v1311 = vadd.f32 %v1309, %v1310
    %v1312 = vrot.slane %v1311, 2
    %v1313 = vadd.f32 %v1311, %v1312
    %v1314 = vrot.slane %v1313, 1
    %v1315 = vadd.f32 %v1313, %v1314
    %v1316 = vsel %vm696, %v1294, 0.0
    %v1317 = vrot.slane %v1316, 4
    %v1318 = vadd.f32 %v1316, %v1317
    %v1319 = vrot.slane %v1318, 2
    %v1320 = vadd.f32 %v1318, %v1319
    %v1321 = vrot.slane %v1320, 1
    %v1322 = vadd.f32 %v1320, %v1321
    %v1323 = vsel %vm696, %v1295, 0.0
    %v1324 = vrot.slane %v1323, 4
    %v1325 = vadd.f32 %v1323, %v1324
    %v1326 = vrot.slane %v1325, 2
    %v1327 = vadd.f32 %v1325, %v1326
    %v1328 = vrot.slane %v1327, 1
    %v1329 = vadd.f32 %v1327, %v1328
    %v1330 = vsel %vm696, %v1296, 0.0
    %v1331 = vrot.slane %v1330, 4
    %v1332 = vadd.f32 %v1330, %v1331
    %v1333 = vrot.slane %v1332, 2
    %v1334 = vadd.f32 %v1332, %v1333
    %v1335 = vrot.slane %v1334, 1
    %v1336 = vadd.f32 %v1334, %v1335
    %v1337 = vsel %vm696, %v1297, 0.0
    %v1338 = vrot.slane %v1337, 4
    %v1339 = vadd.f32 %v1337, %v1338
    %v1340 = vrot.slane %v1339, 2
    %v1341 = vadd.f32 %v1339, %v1340
    %v1342 = vrot.slane %v1341, 1
    %v1343 = vadd.f32 %v1341, %v1342
    %v1344 = vsel %vm696, %v1298, 0.0
    %v1345 = vrot.slane %v1344, 4
    %v1346 = vadd.f32 %v1344, %v1345
    %v1347 = vrot.slane %v1346, 2
    %v1348 = vadd.f32 %v1346, %v1347
    %v1349 = vrot.slane %v1348, 1
    %v1350 = vadd.f32 %v1348, %v1349
    %v1351 = vsel %vm696, %v1299, 0.0
    %v1352 = vrot.slane %v1351, 4
    %v1353 = vadd.f32 %v1351, %v1352
    %v1354 = vrot.slane %v1353, 2
    %v1355 = vadd.f32 %v1353, %v1354
    %v1356 = vrot.slane %v1355, 1
    %v1357 = vadd.f32 %v1355, %v1356
    %v1358 = vsel %vm696, %v1300, 0.0
    %v1359 = vrot.slane %v1358, 4
    %v1360 = vadd.f32 %v1358, %v1359
    %v1361 = vrot.slane %v1360, 2
    %v1362 = vadd.f32 %v1360, %v1361
    %v1363 = vrot.slane %v1362, 1
    %v1364 = vadd.f32 %v1362, %v1363
    %v1365 = vsel %vm696, %v1301, 0.0
    %v1366 = vrot.slane %v1365, 4
    %v1367 = vadd.f32 %v1365, %v1366
    %v1368 = vrot.slane %v1367, 2
    %v1369 = vadd.f32 %v1367, %v1368
    %v1370 = vrot.slane %v1369, 1
    %v1371 = vadd.f32 %v1369, %v1370
    %v1372 = vsel %vm696, %v1302, 0.0
    %v1373 = vrot.slane %v1372, 4
    %v1374 = vadd.f32 %v1372, %v1373
    %v1375 = vrot.slane %v1374, 2
    %v1376 = vadd.f32 %v1374, %v1375
    %v1377 = vrot.slane %v1376, 1
    %v1378 = vadd.f32 %v1376, %v1377
    %v1379 = vsel %vm696, %v1303, 0.0
    %v1380 = vrot.slane %v1379, 4
    %v1381 = vadd.f32 %v1379, %v1380
    %v1382 = vrot.slane %v1381, 2
    %v1383 = vadd.f32 %v1381, %v1382
    %v1384 = vrot.slane %v1383, 1
    %v1385 = vadd.f32 %v1383, %v1384
    %v1386 = vsel %vm696, %v1304, 0.0
    %v1387 = vrot.slane %v1386, 4
    %v1388 = vadd.f32 %v1386, %v1387
    %v1389 = vrot.slane %v1388, 2
    %v1390 = vadd.f32 %v1388, %v1389
    %v1391 = vrot.slane %v1390, 1
    %v1392 = vadd.f32 %v1390, %v1391
    %v1393 = vsel %vm696, %v1305, 0.0
    %v1394 = vrot.slane %v1393, 4
    %v1395 = vadd.f32 %v1393, %v1394
    %v1396 = vrot.slane %v1395, 2
    %v1397 = vadd.f32 %v1395, %v1396
    %v1398 = vrot.slane %v1397, 1
    %v1399 = vadd.f32 %v1397, %v1398
    %v1400 = vsel %vm696, %v1306, 0.0
    %v1401 = vrot.slane %v1400, 4
    %v1402 = vadd.f32 %v1400, %v1401
    %v1403 = vrot.slane %v1402, 2
    %v1404 = vadd.f32 %v1402, %v1403
    %v1405 = vrot.slane %v1404, 1
    %v1406 = vadd.f32 %v1404, %v1405
    %v1407 = vsel %vm696, %v1307, 0.0
    %v1408 = vrot.slane %v1407, 4
    %v1409 = vadd.f32 %v1407, %v1408
    %v1410 = vrot.slane %v1409, 2
    %v1411 = vadd.f32 %v1409, %v1410
    %v1412 = vrot.slane %v1411, 1
    %v1413 = vadd.f32 %v1411, %v1412
    %v1414 = vsel %vm696, %v1308, 0.0
    %v1415 = vrot.slane %v1414, 4
    %v1416 = vadd.f32 %v1414, %v1415
    %v1417 = vrot.slane %v1416, 2
    %v1418 = vadd.f32 %v1416, %v1417
    %v1419 = vrot.slane %v1418, 1
    %v1420 = vadd.f32 %v1418, %v1419
    %1421 = vrot.lane.b32.xlu0 %v290, 72
    %v1422 = vpop.permute.xlu0 %1421
    %1423 = vrot.lane.b32.xlu0 %v291, 72
    %v1424 = vpop.permute.xlu0 %1423
    %v1427 = vmul.f32 %v1001, %v1422
    %v1428 = vmul.f32 %v1002, %v1422
    %v1429 = vmul.f32 %v1003, %v1422
    %v1430 = vmul.f32 %v1004, %v1422
    %v1431 = vmul.f32 %v1005, %v1422
    %v1432 = vmul.f32 %v1006, %v1422
    %v1433 = vmul.f32 %v1007, %v1422
    %v1434 = vmul.f32 %v1008, %v1422
    %v1435 = vmul.f32 %v1009, %v1424
    %v1436 = vmul.f32 %v1010, %v1424
    %v1437 = vmul.f32 %v1011, %v1424
    %v1438 = vmul.f32 %v1012, %v1424
    %v1439 = vmul.f32 %v1013, %v1424
    %v1440 = vmul.f32 %v1014, %v1424
    %v1441 = vmul.f32 %v1015, %v1424
    %v1442 = vmul.f32 %v1016, %v1424
    %v1443 = vsel %vm696, %v1427, 0.0
    %v1444 = vrot.slane %v1443, 4
    %v1445 = vadd.f32 %v1443, %v1444
    %v1446 = vrot.slane %v1445, 2
    %v1447 = vadd.f32 %v1445, %v1446
    %v1448 = vrot.slane %v1447, 1
    %v1449 = vadd.f32 %v1447, %v1448
    %v1450 = vsel %vm696, %v1428, 0.0
    %v1451 = vrot.slane %v1450, 4
    %v1452 = vadd.f32 %v1450, %v1451
    %v1453 = vrot.slane %v1452, 2
    %v1454 = vadd.f32 %v1452, %v1453
    %v1455 = vrot.slane %v1454, 1
    %v1456 = vadd.f32 %v1454, %v1455
    %v1457 = vsel %vm696, %v1429, 0.0
    %v1458 = vrot.slane %v1457, 4
    %v1459 = vadd.f32 %v1457, %v1458
    %v1460 = vrot.slane %v1459, 2
    %v1461 = vadd.f32 %v1459, %v1460
    %v1462 = vrot.slane %v1461, 1
    %v1463 = vadd.f32 %v1461, %v1462
    %v1464 = vsel %vm696, %v1430, 0.0
    %v1465 = vrot.slane %v1464, 4
    %v1466 = vadd.f32 %v1464, %v1465
    %v1467 = vrot.slane %v1466, 2
    %v1468 = vadd.f32 %v1466, %v1467
    %v1469 = vrot.slane %v1468, 1
    %v1470 = vadd.f32 %v1468, %v1469
    %v1471 = vsel %vm696, %v1431, 0.0
    %v1472 = vrot.slane %v1471, 4
    %v1473 = vadd.f32 %v1471, %v1472
    %v1474 = vrot.slane %v1473, 2
    %v1475 = vadd.f32 %v1473, %v1474
    %v1476 = vrot.slane %v1475, 1
    %v1477 = vadd.f32 %v1475, %v1476
    %v1478 = vsel %vm696, %v1432, 0.0
    %v1479 = vrot.slane %v1478, 4
    %v1480 = vadd.f32 %v1478, %v1479
    %v1481 = vrot.slane %v1480, 2
    %v1482 = vadd.f32 %v1480, %v1481
    %v1483 = vrot.slane %v1482, 1
    %v1484 = vadd.f32 %v1482, %v1483
    %v1485 = vsel %vm696, %v1433, 0.0
    %v1486 = vrot.slane %v1485, 4
    %v1487 = vadd.f32 %v1485, %v1486
    %v1488 = vrot.slane %v1487, 2
    %v1489 = vadd.f32 %v1487, %v1488
    %v1490 = vrot.slane %v1489, 1
    %v1491 = vadd.f32 %v1489, %v1490
    %v1492 = vsel %vm696, %v1434, 0.0
    %v1493 = vrot.slane %v1492, 4
    %v1494 = vadd.f32 %v1492, %v1493
    %v1495 = vrot.slane %v1494, 2
    %v1496 = vadd.f32 %v1494, %v1495
    %v1497 = vrot.slane %v1496, 1
    %v1498 = vadd.f32 %v1496, %v1497
    %v1499 = vsel %vm696, %v1435, 0.0
    %v1500 = vrot.slane %v1499, 4
    %v1501 = vadd.f32 %v1499, %v1500
    %v1502 = vrot.slane %v1501, 2
    %v1503 = vadd.f32 %v1501, %v1502
    %v1504 = vrot.slane %v1503, 1
    %v1505 = vadd.f32 %v1503, %v1504
    %v1506 = vsel %vm696, %v1436, 0.0
    %v1507 = vrot.slane %v1506, 4
    %v1508 = vadd.f32 %v1506, %v1507
    %v1509 = vrot.slane %v1508, 2
    %v1510 = vadd.f32 %v1508, %v1509
    %v1511 = vrot.slane %v1510, 1
    %v1512 = vadd.f32 %v1510, %v1511
    %v1513 = vsel %vm696, %v1437, 0.0
    %v1514 = vrot.slane %v1513, 4
    %v1515 = vadd.f32 %v1513, %v1514
    %v1516 = vrot.slane %v1515, 2
    %v1517 = vadd.f32 %v1515, %v1516
    %v1518 = vrot.slane %v1517, 1
    %v1519 = vadd.f32 %v1517, %v1518
    %v1520 = vsel %vm696, %v1438, 0.0
    %v1521 = vrot.slane %v1520, 4
    %v1522 = vadd.f32 %v1520, %v1521
    %v1523 = vrot.slane %v1522, 2
    %v1524 = vadd.f32 %v1522, %v1523
    %v1525 = vrot.slane %v1524, 1
    %v1526 = vadd.f32 %v1524, %v1525
    %v1527 = vsel %vm696, %v1439, 0.0
    %v1528 = vrot.slane %v1527, 4
    %v1529 = vadd.f32 %v1527, %v1528
    %v1530 = vrot.slane %v1529, 2
    %v1531 = vadd.f32 %v1529, %v1530
    %v1532 = vrot.slane %v1531, 1
    %v1533 = vadd.f32 %v1531, %v1532
    %v1534 = vsel %vm696, %v1440, 0.0
    %v1535 = vrot.slane %v1534, 4
    %v1536 = vadd.f32 %v1534, %v1535
    %v1537 = vrot.slane %v1536, 2
    %v1538 = vadd.f32 %v1536, %v1537
    %v1539 = vrot.slane %v1538, 1
    %v1540 = vadd.f32 %v1538, %v1539
    %v1541 = vsel %vm696, %v1441, 0.0
    %v1542 = vrot.slane %v1541, 4
    %v1543 = vadd.f32 %v1541, %v1542
    %v1544 = vrot.slane %v1543, 2
    %v1545 = vadd.f32 %v1543, %v1544
    %v1546 = vrot.slane %v1545, 1
    %v1547 = vadd.f32 %v1545, %v1546
    %v1548 = vsel %vm696, %v1442, 0.0
    %v1549 = vrot.slane %v1548, 4
    %v1550 = vadd.f32 %v1548, %v1549
    %v1551 = vrot.slane %v1550, 2
    %v1552 = vadd.f32 %v1550, %v1551
    %v1553 = vrot.slane %v1552, 1
    %v1554 = vadd.f32 %v1552, %v1553
    %vm1571 = vcmask 1041409
    %v1572 = vsel %vm1571, %v1054, %v1047
    %vm1573 = vcmask 1042434
    %v1574 = vsel %vm1573, %v1061, %v1572
    %vm1575 = vcmask 1043459
    %v1576 = vsel %vm1575, %v1068, %v1574
    %vm1577 = vcmask 1044484
    %v1578 = vsel %vm1577, %v1075, %v1576
    %vm1579 = vcmask 1045509
    %v1580 = vsel %vm1579, %v1082, %v1578
    %vm1581 = vcmask 1046534
    %v1582 = vsel %vm1581, %v1089, %v1580
    %vm1583 = vcmask 1047559
    %v1584 = vsel %vm1583, %v1096, %v1582
    %v1585 = vsel %vm1571, %v1110, %v1103
    %v1586 = vsel %vm1573, %v1117, %v1585
    %v1587 = vsel %vm1575, %v1124, %v1586
    %v1588 = vsel %vm1577, %v1131, %v1587
    %v1589 = vsel %vm1579, %v1138, %v1588
    %v1590 = vsel %vm1581, %v1145, %v1589
    %v1591 = vsel %vm1583, %v1152, %v1590
    %v1610 = vsel %vm1571, %v1188, %v1181
    %v1611 = vsel %vm1573, %v1195, %v1610
    %v1612 = vsel %vm1575, %v1202, %v1611
    %v1613 = vsel %vm1577, %v1209, %v1612
    %v1614 = vsel %vm1579, %v1216, %v1613
    %v1615 = vsel %vm1581, %v1223, %v1614
    %v1616 = vsel %vm1583, %v1230, %v1615
    %v1617 = vsel %vm1571, %v1244, %v1237
    %v1618 = vsel %vm1573, %v1251, %v1617
    %v1619 = vsel %vm1575, %v1258, %v1618
    %v1620 = vsel %vm1577, %v1265, %v1619
    %v1621 = vsel %vm1579, %v1272, %v1620
    %v1622 = vsel %vm1581, %v1279, %v1621
    %v1623 = vsel %vm1583, %v1286, %v1622
    %1624 = vrot.lane.b32.xlu0 %v1616, 8
    %v1625 = vpop.permute.xlu0 %1624
    %1626 = vrot.lane.b32.xlu0 %v1623, 8
    %v1627 = vpop.permute.xlu0 %1626
    %v1646 = vsel %vm1571, %v1322, %v1315
    %v1647 = vsel %vm1573, %v1329, %v1646
    %v1648 = vsel %vm1575, %v1336, %v1647
    %v1649 = vsel %vm1577, %v1343, %v1648
    %v1650 = vsel %vm1579, %v1350, %v1649
    %v1651 = vsel %vm1581, %v1357, %v1650
    %v1652 = vsel %vm1583, %v1364, %v1651
    %v1653 = vsel %vm1571, %v1378, %v1371
    %v1654 = vsel %vm1573, %v1385, %v1653
    %v1655 = vsel %vm1575, %v1392, %v1654
    %v1656 = vsel %vm1577, %v1399, %v1655
    %v1657 = vsel %vm1579, %v1406, %v1656
    %v1658 = vsel %vm1581, %v1413, %v1657
    %v1659 = vsel %vm1583, %v1420, %v1658
    %1660 = vrot.lane.b32.xlu0 %v1652, 16
    %v1661 = vpop.permute.xlu0 %1660
    %1662 = vrot.lane.b32.xlu0 %v1659, 16
    %v1663 = vpop.permute.xlu0 %1662
    %v1682 = vsel %vm1571, %v1456, %v1449
    %v1683 = vsel %vm1573, %v1463, %v1682
    %v1684 = vsel %vm1575, %v1470, %v1683
    %v1685 = vsel %vm1577, %v1477, %v1684
    %v1686 = vsel %vm1579, %v1484, %v1685
    %v1687 = vsel %vm1581, %v1491, %v1686
    %v1688 = vsel %vm1583, %v1498, %v1687
    %v1689 = vsel %vm1571, %v1512, %v1505
    %v1690 = vsel %vm1573, %v1519, %v1689
    %v1691 = vsel %vm1575, %v1526, %v1690
    %v1692 = vsel %vm1577, %v1533, %v1691
    %v1693 = vsel %vm1579, %v1540, %v1692
    %v1694 = vsel %vm1581, %v1547, %v1693
    %v1695 = vsel %vm1583, %v1554, %v1694
    %1696 = vrot.lane.b32.xlu0 %v1688, 24
    %v1697 = vpop.permute.xlu0 %1696
    %1698 = vrot.lane.b32.xlu0 %v1695, 24
    %v1699 = vpop.permute.xlu0 %1698
    %v1702 = vsel %vm696, %v1584, %v1625
    %v1703 = vsel %vm696, %v1591, %v1627
    %vm1704 = vcmask 130048
    %v1705 = vsel %vm1704, %v1702, %v1661
    %v1706 = vsel %vm1704, %v1703, %v1663
    %vm1707 = vcmask 195584
    %v1708 = vsel %vm1707, %v1705, %v1697
    %v1709 = vsel %vm1707, %v1706, %v1699
    %v1710 = vld [vmem:[#allocation7] sm:$0xff]
    %v1711 = vld [vmem:[#allocation7 + $0x8] sm:$0xff]
    %v1712 = vld [vmem:[#allocation7 + $0x10] sm:$0xff]
    %v1713 = vld [vmem:[#allocation7 + $0x18] sm:$0xff]
    %v1714 = vlaneseq
    %v1715 = vshrl.u32 %v1714, 7
    %v1716 = vsub.s32 3, %v1715
    %v1717 = vrot.slane %v100, %v1716
    %v1719 = vsel %vm109, %v1708, 0
    %v1722 = vsel %vm109, %v1709, 0
    %1724 = vmatprep.subr.mxu0 0.0
    %1725 = vmatpush1.msra.mxu0 %v1710
    %1726 = vmatprep.subr.mxu0 0.0
    %1727 = vmatpush1.msra.mxu0 %v1711
    %1728 = vmatprep.subr.mxu0 0.0
    %1729 = vmatpush1.msra.mxu0 %v1712
    %1730 = vmatprep.subr.mxu0 0.0
    %1731 = vmatpush1.msra.mxu0 %v1713
    %1732 = vmatprep.subr.mxu0 0.0
    %1733 = vmatpush1.msra.mxu0 0.0
    %1734 = vmatprep.subr.mxu0 0.0
    %1735 = vmatpush1.msra.mxu0 0.0
    %1736 = vmatprep.subr.mxu0 0.0
    %1737 = vmatpush1.msra.mxu0 0.0
    %1738 = vmatprep.subr.mxu0 0.0
    %1739 = vmatpush1.msra.mxu0 0.0
    %1740 = vmatprep.subr.mxu0 0.0
    %1741 = vmatpush1.msra.mxu0 0.0
    %1742 = vmatprep.subr.mxu0 0.0
    %1743 = vmatpush1.msra.mxu0 0.0
    %1744 = vmatprep.subr.mxu0 0.0
    %1745 = vmatpush1.msra.mxu0 0.0
    %1746 = vmatprep.subr.mxu0 0.0
    %1747 = vmatpush1.msra.mxu0 0.0
    %1748 = vmatprep.subr.mxu0 0.0
    %1749 = vmatpush1.msra.mxu0 0.0
    %1750 = vmatprep.subr.mxu0 0.0
    %1751 = vmatpush1.msra.mxu0 0.0
    %1752 = vmatprep.subr.mxu0 0.0
    %1753 = vmatpush1.msra.mxu0 0.0
    %1754 = vmatprep.subr.mxu0 0.0
    %1755 = vmatpush1.msra.mxu0 0.0
    %1756 = vmatprep.subr.mxu0 0.0
    %1757 = vmatpush1.msra.mxu0 0.0
    %1758 = vmatprep.subr.mxu0 0.0
    %1759 = vmatpush1.msra.mxu0 0.0
    %1760 = vmatprep.subr.mxu0 0.0
    %1761 = vmatpush1.msra.mxu0 0.0
    %1762 = vmatprep.subr.mxu0 0.0
    %1763 = vmatpush1.msra.mxu0 0.0
    %1764 = vmatprep.subr.mxu0 0.0
    %1765 = vmatpush1.msra.mxu0 0.0
    %1766 = vmatprep.subr.mxu0 0.0
    %1767 = vmatpush1.msra.mxu0 0.0
    %1768 = vmatprep.subr.mxu0 0.0
    %1769 = vmatpush1.msra.mxu0 0.0
    %1770 = vmatprep.subr.mxu0 0.0
    %1771 = vmatpush1.msra.mxu0 0.0
    %1772 = vmatprep.subr.mxu0 0.0
    %1773 = vmatpush1.msra.mxu0 0.0
    %1774 = vmatprep.subr.mxu0 0.0
    %1775 = vmatpush1.msra.mxu0 0.0
    %1776 = vmatprep.subr.mxu0 0.0
    %1777 = vmatpush1.msra.mxu0 0.0
    %1778 = vmatprep.subr.mxu0 0.0
    %1779 = vmatpush1.msra.mxu0 0.0
    %1780 = vmatprep.subr.mxu0 0.0
    %1781 = vmatpush1.msra.mxu0 0.0
    %1782 = vmatprep.subr.mxu0 0.0
    %1783 = vmatpush1.msra.mxu0 0.0
    %1784 = vmatprep.subr.mxu0 0.0
    %1785 = vmatpush1.msra.mxu0 0.0
    %1786 = vmatprep.subr.mxu0 0.0
    %1787 = vmatpush1.msra.mxu0 0.0
    %1788 = vmatprep.mubr.f32.mxu0 0.0
    %1789 = vmatmul.mubr.f32.gmra.mrb[0].mxu0 %v1719
    %v1790 = vpop.f32.mrb[0].mxu0
    %v1791 = vadd.f32 %v1717, %v1790
    %v1792 = vpop.f32.mrb[0].mxu0
    %1793 = vmatprep.mubr.f32.mxu0 0.0
    %1794 = vmatmul.mubr.f32.gmra.mrb[0].mxu0 %v1722
    %v1795 = vpop.f32.mrb[0].mxu0
    %v1796 = vadd.f32 %v1717, %v1795
    %v1797 = vpop.f32.mrb[0].mxu0
    %1798 = vdwg.mxu0
    %v1799 = vadd.f32 %v96, %v1791
    %v1800 = vadd.f32 %v97, %v1796
    %v1801 = vsel %vm109, %v1799, 0.0
    %v1802 = vsel %vm109, %v1800, 0.0
    %v1803 = vadd.f32 %v1801, %v1802
    %v1804 = vrot.slane %v1803, 4
    %v1805 = vadd.f32 %v1803, %v1804
    %v1806 = vrot.slane %v1805, 2
    %v1807 = vadd.f32 %v1805, %v1806
    %v1808 = vrot.slane %v1807, 1
    %v1809 = vadd.f32 %v1807, %v1808
    %v1810 = vrcp.pop 16.0
    %v1811 = vmul.f32 %v1809, %v1810
    %v1812 = vmul.f32 %v1799, %v1799
    %v1813 = vmul.f32 %v1800, %v1800
    %v1814 = vsel %vm109, %v1812, 0.0
    %v1815 = vsel %vm109, %v1813, 0.0
    %v1816 = vadd.f32 %v1814, %v1815
    %v1817 = vrot.slane %v1816, 4
    %v1818 = vadd.f32 %v1816, %v1817
    %v1819 = vrot.slane %v1818, 2
    %v1820 = vadd.f32 %v1818, %v1819
    %v1821 = vrot.slane %v1820, 1
    %v1822 = vadd.f32 %v1820, %v1821
    %v1823 = vmul.f32 %v1822, %v1810
    %v1824 = vmul.f32 %v1811, %v1811
    %v1825 = vsub.f32 %v1823, %v1824
    %v1826 = vmax.f32 %v1825, 0.0
    %v1827 = vsub.f32 %v1799, %v1811
    %v1828 = vsub.f32 %v1800, %v1811
    %v1829 = vadd.f32 %v1826, 1e-05
    %v1830 = vrsqrt.pop %v1829
    %v1831 = vmul.f32 %v1827, %v1830
    %v1832 = vmul.f32 %v1828, %v1830
    %v1833 = vlaneseq
    %v1834 = vshrl.u32 %v1833, 7
    %v1835 = vsub.s32 4, %v1834
    %v1836 = vrot.slane %v100, %v1835
    %v1837 = vmul.f32 %v1831, %v1836
    %v1838 = vmul.f32 %v1832, %v1836
    %v1839 = vlaneseq
    %v1840 = vshrl.u32 %v1839, 7
    %v1841 = vsub.s32 5, %v1840
    %v1842 = vrot.slane %v100, %v1841
    %v1843 = vadd.f32 %v1837, %v1842
    %v1844 = vadd.f32 %v1838, %v1842
    %v1845 = vld [vmem:[#allocation8] sm:$0xff]
    %v1846 = vld [vmem:[#allocation8 + $0x8] sm:$0xff]
    %v1847 = vld [vmem:[#allocation8 + $0x10] sm:$0xff]
    %v1848 = vld [vmem:[#allocation8 + $0x18] sm:$0xff]
    %v1849 = vlaneseq
    %v1850 = vshrl.u32 %v1849, 7
    %v1851 = vsub.s32 6, %v1850
    %v1852 = vrot.slane %v100, %v1851
    %v1854 = vsel %vm109, %v1843, 0
    %v1857 = vsel %vm109, %v1844, 0
    %1859 = vmatprep.subr.mxu0 0.0
    %1860 = vmatpush1.msra.mxu0 %v1845
    %1861 = vmatprep.subr.mxu0 0.0
    %1862 = vmatpush1.msra.mxu0 %v1846
    %1863 = vmatprep.subr.mxu0 0.0
    %1864 = vmatpush1.msra.mxu0 %v1847
    %1865 = vmatprep.subr.mxu0 0.0
    %1866 = vmatpush1.msra.mxu0 %v1848
    %1867 = vmatprep.subr.mxu0 0.0
    %1868 = vmatpush1.msra.mxu0 0.0
    %1869 = vmatprep.subr.mxu0 0.0
    %1870 = vmatpush1.msra.mxu0 0.0
    %1871 = vmatprep.subr.mxu0 0.0
    %1872 = vmatpush1.msra.mxu0 0.0
    %1873 = vmatprep.subr.mxu0 0.0
    %1874 = vmatpush1.msra.mxu0 0.0
    %1875 = vmatprep.subr.mxu0 0.0
    %1876 = vmatpush1.msra.mxu0 0.0
    %1877 = vmatprep.subr.mxu0 0.0
    %1878 = vmatpush1.msra.mxu0 0.0
    %1879 = vmatprep.subr.mxu0 0.0
    %1880 = vmatpush1.msra.mxu0 0.0
    %1881 = vmatprep.subr.mxu0 0.0
    %1882 = vmatpush1.msra.mxu0 0.0
    %1883 = vmatprep.subr.mxu0 0.0
    %1884 = vmatpush1.msra.mxu0 0.0
    %1885 = vmatprep.subr.mxu0 0.0
    %1886 = vmatpush1.msra.mxu0 0.0
    %1887 = vmatprep.subr.mxu0 0.0
    %1888 = vmatpush1.msra.mxu0 0.0
    %1889 = vmatprep.subr.mxu0 0.0
    %1890 = vmatpush1.msra.mxu0 0.0
    %1891 = vmatprep.subr.mxu0 0.0
    %1892 = vmatpush1.msra.mxu0 0.0
    %1893 = vmatprep.subr.mxu0 0.0
    %1894 = vmatpush1.msra.mxu0 0.0
    %1895 = vmatprep.subr.mxu0 0.0
    %1896 = vmatpush1.msra.mxu0 0.0
    %1897 = vmatprep.subr.mxu0 0.0
    %1898 = vmatpush1.msra.mxu0 0.0
    %1899 = vmatprep.subr.mxu0 0.0
    %1900 = vmatpush1.msra.mxu0 0.0
    %1901 = vmatprep.subr.mxu0 0.0
    %1902 = vmatpush1.msra.mxu0 0.0
    %1903 = vmatprep.subr.mxu0 0.0
    %1904 = vmatpush1.msra.mxu0 0.0
    %1905 = vmatprep.subr.mxu0 0.0
    %1906 = vmatpush1.msra.mxu0 0.0
    %1907 = vmatprep.subr.mxu0 0.0
    %1908 = vmatpush1.msra.mxu0 0.0
    %1909 = vmatprep.subr.mxu0 0.0
    %1910 = vmatpush1.msra.mxu0 0.0
    %1911 = vmatprep.subr.mxu0 0.0
    %1912 = vmatpush1.msra.mxu0 0.0
    %1913 = vmatprep.subr.mxu0 0.0
    %1914 = vmatpush1.msra.mxu0 0.0
    %1915 = vmatprep.subr.mxu0 0.0
    %1916 = vmatpush1.msra.mxu0 0.0
    %1917 = vmatprep.subr.mxu0 0.0
    %1918 = vmatpush1.msra.mxu0 0.0
    %1919 = vmatprep.subr.mxu0 0.0
    %1920 = vmatpush1.msra.mxu0 0.0
    %1921 = vmatprep.subr.mxu0 0.0
    %1922 = vmatpush1.msra.mxu0 0.0
    %1923 = vmatprep.mubr.f32.mxu0 0.0
    %1924 = vmatmul.mubr.f32.gmra.mrb[0].mxu0 %v1854
    %v1925 = vpop.f32.mrb[0].mxu0
    %v1926 = vadd.f32 %v1852, %v1925
    %v1927 = vpop.f32.mrb[0].mxu0
    %1928 = vmatprep.mubr.f32.mxu0 0.0
    %1929 = vmatmul.mubr.f32.gmra.mrb[0].mxu0 %v1857
    %v1930 = vpop.f32.mrb[0].mxu0
    %v1931 = vadd.f32 %v1852, %v1930
    %v1932 = vpop.f32.mrb[0].mxu0
    %1933 = vdwg.mxu0
    %v1934 = vtanh.pop %v1926
    %v1935 = vtanh.pop %v1931
    %v1936 = vld [vmem:[%s6] sm:$0xff]
    %v1937 = vld [vmem:[%s6 + $0x8] sm:$0xff]
    %v1938 = vld [vmem:[%s6 + $0x10] sm:$0xff]
    %v1939 = vld [vmem:[%s6 + $0x18] sm:$0xff]
    %v1940 = vlaneseq
    %v1941 = vshrl.u32 %v1940, 7
    %v1942 = vsub.s32 7, %v1941
    %v1943 = vrot.slane %v100, %v1942
    %v1945 = vsel %vm109, %v1934, 0
    %v1948 = vsel %vm109, %v1935, 0
    %1950 = vmatprep.subr.mxu0 0.0
    %1951 = vmatpush1.msra.mxu0 %v1936
    %1952 = vmatprep.subr.mxu0 0.0
    %1953 = vmatpush1.msra.mxu0 %v1937
    %1954 = vmatprep.subr.mxu0 0.0
    %1955 = vmatpush1.msra.mxu0 %v1938
    %1956 = vmatprep.subr.mxu0 0.0
    %1957 = vmatpush1.msra.mxu0 %v1939
    %1958 = vmatprep.subr.mxu0 0.0
    %1959 = vmatpush1.msra.mxu0 0.0
    %1960 = vmatprep.subr.mxu0 0.0
    %1961 = vmatpush1.msra.mxu0 0.0
    %1962 = vmatprep.subr.mxu0 0.0
    %1963 = vmatpush1.msra.mxu0 0.0
    %1964 = vmatprep.subr.mxu0 0.0
    %1965 = vmatpush1.msra.mxu0 0.0
    %1966 = vmatprep.subr.mxu0 0.0
    %1967 = vmatpush1.msra.mxu0 0.0
    %1968 = vmatprep.subr.mxu0 0.0
    %1969 = vmatpush1.msra.mxu0 0.0
    %1970 = vmatprep.subr.mxu0 0.0
    %1971 = vmatpush1.msra.mxu0 0.0
    %1972 = vmatprep.subr.mxu0 0.0
    %1973 = vmatpush1.msra.mxu0 0.0
    %1974 = vmatprep.subr.mxu0 0.0
    %1975 = vmatpush1.msra.mxu0 0.0
    %1976 = vmatprep.subr.mxu0 0.0
    %1977 = vmatpush1.msra.mxu0 0.0
    %1978 = vmatprep.subr.mxu0 0.0
    %1979 = vmatpush1.msra.mxu0 0.0
    %1980 = vmatprep.subr.mxu0 0.0
    %1981 = vmatpush1.msra.mxu0 0.0
    %1982 = vmatprep.subr.mxu0 0.0
    %1983 = vmatpush1.msra.mxu0 0.0
    %1984 = vmatprep.subr.mxu0 0.0
    %1985 = vmatpush1.msra.mxu0 0.0
    %1986 = vmatprep.subr.mxu0 0.0
    %1987 = vmatpush1.msra.mxu0 0.0
    %1988 = vmatprep.subr.mxu0 0.0
    %1989 = vmatpush1.msra.mxu0 0.0
    %1990 = vmatprep.subr.mxu0 0.0
    %1991 = vmatpush1.msra.mxu0 0.0
    %1992 = vmatprep.subr.mxu0 0.0
    %1993 = vmatpush1.msra.mxu0 0.0
    %1994 = vmatprep.subr.mxu0 0.0
    %1995 = vmatpush1.msra.mxu0 0.0
    %1996 = vmatprep.subr.mxu0 0.0
    %1997 = vmatpush1.msra.mxu0 0.0
    %1998 = vmatprep.subr.mxu0 0.0
    %1999 = vmatpush1.msra.mxu0 0.0
    %2000 = vmatprep.subr.mxu0 0.0
    %2001 = vmatpush1.msra.mxu0 0.0
    %2002 = vmatprep.subr.mxu0 0.0
    %2003 = vmatpush1.msra.mxu0 0.0
    %2004 = vmatprep.subr.mxu0 0.0
    %2005 = vmatpush1.msra.mxu0 0.0
    %2006 = vmatprep.subr.mxu0 0.0
    %2007 = vmatpush1.msra.mxu0 0.0
    %2008 = vmatprep.subr.mxu0 0.0
    %2009 = vmatpush1.msra.mxu0 0.0
    %2010 = vmatprep.subr.mxu0 0.0
    %2011 = vmatpush1.msra.mxu0 0.0
    %2012 = vmatprep.subr.mxu0 0.0
    %2013 = vmatpush1.msra.mxu0 0.0
    %2014 = vmatprep.mubr.f32.mxu0 0.0
    %2015 = vmatmul.mubr.f32.gmra.mrb[0].mxu0 %v1945
    %v2016 = vpop.f32.mrb[0].mxu0
    %v2017 = vadd.f32 %v1943, %v2016
    %v2018 = vpop.f32.mrb[0].mxu0
    %2019 = vmatprep.mubr.f32.mxu0 0.0
    %2020 = vmatmul.mubr.f32.gmra.mrb[0].mxu0 %v1948
    %v2021 = vpop.f32.mrb[0].mxu0
    %v2022 = vadd.f32 %v1943, %v2021
    %v2023 = vpop.f32.mrb[0].mxu0
    %2024 = vdwg.mxu0
    %2025 = vst.msk [vmem:[#allocation11] sm:$0xff] %vm1704, %v2017
    %2026 = vst.msk [vmem:[#allocation11 + $0x8] sm:$0xff] %vm1704, %v2022
    // Predicated region
    $region54: #{wikisql_base_forward.1} parent=1 // pred_check
      _
    $region55: #{wikisql_base_forward.1} parent=1 // pred_check_branch
      %2028 = sbr.rel (0) target = $region57
    $region56: #{wikisql_base_forward.1} parent=1 // pred_region
      %s2030 = ssub.s32 256, 256
      %2031 = vsyncadd [#allocation4], %s2030
      %s2032 = sshll.u32 [#allocation11], 4
      %s2033 = int_to_ptr.vmem [resolvable:$true] %s2032
      %2038 = dma.vmem_to_hbm [thread:$0]  %s2033, 256, %s8, [#allocation4], 128, 128, 8
    $region57: #{wikisql_base_forward.1} parent=1 // pred_fallthru
      _
    // Predicated region
    $region58: #{wikisql_base_forward.1} parent=1 // pred_check
      _
    $region59: #{wikisql_base_forward.1} parent=1 // pred_check_branch
      %2040 = sbr.rel (0) target = $region61
    $region60: #{wikisql_base_forward.1} parent=1 // pred_region
      %2041 = dma.done [#allocation4], 256
    $region61: #{wikisql_base_forward.1} parent=1 // pred_fallthru
      _
    %2042 = vsyncpa [#allocation3], 1
    %2043 = vsyncpa [#allocation6], 1
    %2044 = vsyncpa [#allocation9], 1
    %2045 = vsyncpa [#allocation4], 1

</llo_original>
